<compile_context>
chip_gen: v6e
topology: v6e:2x2x1
jax: 0.10.0
libtpu: 0.0.40
codegen_flags: <defaults>
</compile_context>

<pallas_src>
import jax
import jax.numpy as jnp
import numpy as np
from jax.experimental import pallas as pl
from jax.experimental.pallas import tpu as pltpu  # noqa: F401


# ----------------------------- Pallas kernel --------------------------------
def bigru_fused_kernel(x_ref, h0_ref, wihf_ref, wihb_ref, whh_ref, bias_ref,
                       bhhn_ref, out_ref, hfin_ref):
    """Fused bidirectional GRU recurrence (both directions per step).

    Column "slot" layout used everywhere (gate-major, direction-minor):
        [ r_f | r_b | z_f | z_b | n_f | n_b ]  each H lanes wide (6H total)
    and the hidden state is kept direction-paired:  h_wide = [ h_f | h_b ].

    Shapes (whole arrays, resident in VMEM):
      x_ref   : (T*BP, E)   embedded input, batch padded to BP, time-major rows
      h0_ref  : (BP, 2H)    initial hidden, [h_fwd | h_bwd]
      wihf_ref: (E, 6H)     forward  W_ih^T in fwd slots, zeros in bwd slots
      wihb_ref: (E, 6H)     backward W_ih^T in bwd slots, zeros in fwd slots
      whh_ref : (2H, 6H)    block "diagonal": rows 0:H -> fwd slots, rows H:2H -> bwd slots
      bias_ref: (1, 6H)     b_ih (+ b_hh for r,z slots) for both directions
      bhhn_ref: (1, 2H)     [b_hh_n fwd | b_hh_n bwd]  (must stay inside r*(.))
      out_ref : (T*BP, 2H)  per-timestep hidden, original time order, [fwd | bwd]
      hfin_ref: (BP, 2H)    final hidden [h_fwd(T-1) | h_bwd(0)]
    """
    TBP = x_ref.shape[0]
    BP, H2 = h0_ref.shape          # H2 = 2H
    H = H2 // 2
    T = TBP // BP

    x = x_ref[...]

    # Batched input projections for all T steps and both directions.  These are
    # off the serial critical path; the combined bias (both directions' slots)
    # is folded in once here, broadcast over all T*BP rows.
    gi_f = jnp.dot(x, wihf_ref[...], preferred_element_type=jnp.float32) + bias_ref[...]
    gi_b = jnp.dot(x, wihb_ref[...], preferred_element_type=jnp.float32)

    whh = whh_ref[...]                                        # (2H, 6H)
    bhh_n = jnp.broadcast_to(bhhn_ref[...], (BP, H2))         # hoisted out of loop

    h = h0_ref[...].astype(jnp.float32)                       # (BP, 2H) = [h_f | h_b]

    hs = []
    # Fully unrolled recurrence; per step only ONE matmul + gate math remain on
    # the serial chain (both directions share it via the block-diagonal whh).
    for t in range(T):
        tb = T - 1 - t                                        # backward time index
        gi = gi_f[t * BP:(t + 1) * BP, :] + gi_b[tb * BP:(tb + 1) * BP, :]   # (BP, 6H)
        gh = jnp.dot(h, whh, preferred_element_type=jnp.float32)            # (BP, 6H)

        r = jax.nn.sigmoid(gi[:, :H2] + gh[:, :H2])
        z = jax.nn.sigmoid(gi[:, H2:2 * H2] + gh[:, H2:2 * H2])
        n = jnp.tanh(gi[:, 2 * H2:] + r * (gh[:, 2 * H2:] + bhh_n))
        h = (1.0 - z) * n + z * h
        hs.append(h)

    # Assemble the whole output once (single full-block store), already in
    # original time order: fwd half from step t, bwd half from step T-1-t.
    out_f = jnp.concatenate([hs[t][:, :H] for t in range(T)], axis=0)            # (T*BP, H)
    out_b = jnp.concatenate([hs[T - 1 - t][:, H:] for t in range(T)], axis=0)    # (T*BP, H)
    out_ref[...] = jnp.concatenate([out_f, out_b], axis=1).astype(out_ref.dtype)
    hfin_ref[...] = h.astype(hfin_ref.dtype)


# ------------------------- one-time parameter prep ---------------------------
def prepare_gru_params(w_ih, w_hh, b_ih, b_hh):
    """Rearranges PyTorch-layout GRU weights into the kernel's slot layout.

    w_ih: (2, 3H, E), w_hh: (2, 3H, H), b_ih/b_hh: (2, 3H), gate order (r,z,n).
    Done once (weights are parameters), outside the per-call path.
    """
    H = w_hh.shape[-1]
    E = w_ih.shape[-1]

    def gate_t(w, d, g):                      # W_gate^T for direction d -> (X, H)
        return jnp.transpose(w[d, g * H:(g + 1) * H, :], (1, 0))

    zE = jnp.zeros((E, H), jnp.float32)
    zH = jnp.zeros((H, H), jnp.float32)

    # Slot order: [r_f, r_b, z_f, z_b, n_f, n_b]
    wih_f = jnp.concatenate([gate_t(w_ih, 0, 0), zE, gate_t(w_ih, 0, 1), zE,
                             gate_t(w_ih, 0, 2), zE], axis=1)                 # (E, 6H)
    wih_b = jnp.concatenate([zE, gate_t(w_ih, 1, 0), zE, gate_t(w_ih, 1, 1),
                             zE, gate_t(w_ih, 1, 2)], axis=1)                 # (E, 6H)

    whh_f_rows = jnp.concatenate([gate_t(w_hh, 0, 0), zH, gate_t(w_hh, 0, 1), zH,
                                  gate_t(w_hh, 0, 2), zH], axis=1)            # (H, 6H)
    whh_b_rows = jnp.concatenate([zH, gate_t(w_hh, 1, 0), zH, gate_t(w_hh, 1, 1),
                                  zH, gate_t(w_hh, 1, 2)], axis=1)            # (H, 6H)
    whh_cat = jnp.concatenate([whh_f_rows, whh_b_rows], axis=0)               # (2H, 6H)

    def bias_slot(d, g, fold_hh):
        v = b_ih[d, g * H:(g + 1) * H]
        return v + b_hh[d, g * H:(g + 1) * H] if fold_hh else v

    # r/z slots fold b_ih + b_hh; n slots only b_ih (b_hh_n stays inside r*(.)).
    bias = jnp.concatenate([bias_slot(0, 0, True), bias_slot(1, 0, True),
                            bias_slot(0, 1, True), bias_slot(1, 1, True),
                            bias_slot(0, 2, False), bias_slot(1, 2, False)])[None, :]  # (1, 6H)
    bhh_n = jnp.concatenate([b_hh[0, 2 * H:], b_hh[1, 2 * H:]])[None, :]               # (1, 2H)

    return (wih_f.astype(jnp.float32), wih_b.astype(jnp.float32),
            whh_cat.astype(jnp.float32), bias.astype(jnp.float32),
            bhh_n.astype(jnp.float32))


# ------------------------------ forward wrapper -------------------------------
def encoder_rnn_forward(embedded, hidden, params):
    """Bidirectional GRU encoder forward (input_lengths=None path).

    embedded: (T, B, E) f32, hidden: (2, B, H) f32, params from prepare_gru_params.
    returns: output (T, B, 2H), hidden_out (1, B, 2H)
    """
    wih_f, wih_b, whh_cat, bias, bhh_n = params
    T, B, E = embedded.shape
    H = hidden.shape[-1]
    BP = ((B + 7) // 8) * 8                    # pad batch to a full sublane tile

    h0 = jnp.transpose(hidden, (1, 0, 2)).reshape(B, 2 * H)     # [h_f | h_b] per row
    x = embedded
    if BP != B:
        x = jnp.pad(x, ((0, 0), (0, BP - B), (0, 0)))
        h0 = jnp.pad(h0, ((0, BP - B), (0, 0)))
    x = x.reshape(T * BP, E)

    out_flat, h_fin = pl.pallas_call(
        bigru_fused_kernel,
        out_shape=(jax.ShapeDtypeStruct((T * BP, 2 * H), jnp.float32),
                   jax.ShapeDtypeStruct((BP, 2 * H), jnp.float32)),
    )(x, h0, wih_f, wih_b, whh_cat, bias, bhh_n)

    output = out_flat.reshape(T, BP, 2 * H)[:, :B, :]            # (T, B, 2H)
    hidden_out = h_fin[:B][None]                                 # (1, B, 2H)
    return output, hidden_out


# --------------------------- pure-JAX reference --------------------------------
def _gru_dir_ref(x, h0, w_ih, w_hh, b_ih, b_hh):
    H = h0.shape[-1]

    def step(h, xt):
        gi = xt @ w_ih.T + b_ih
        gh = h @ w_hh.T + b_hh
        i_r, i_z, i_n = gi[:, :H], gi[:, H:2 * H], gi[:, 2 * H:]
        h_r, h_z, h_n = gh[:, :H], gh[:, H:2 * H], gh[:, 2 * H:]
        r = jax.nn.sigmoid(i_r + h_r)
        z = jax.nn.sigmoid(i_z + h_z)
        n = jnp.tanh(i_n + r * h_n)
        hn = (1.0 - z) * n + z * h
        return hn, hn

    hT, ys = jax.lax.scan(step, h0, x)
    return ys, hT


def encoder_rnn_reference(embedded, hidden, w_ih, w_hh, b_ih, b_hh):
    fwd_out, fwd_h = _gru_dir_ref(embedded, hidden[0], w_ih[0], w_hh[0], b_ih[0], b_hh[0])
    bwd_out, bwd_h = _gru_dir_ref(embedded[::-1], hidden[1], w_ih[1], w_hh[1], b_ih[1], b_hh[1])
    bwd_out = bwd_out[::-1]
    output = jnp.concatenate([fwd_out, bwd_out], axis=-1)
    hidden_out = jnp.concatenate([fwd_h, bwd_h], axis=-1)[None]
    return output, hidden_out


# --------------------------------- main ----------------------------------------
if __name__ == "__main__":
    T, B, E, H = 8, 2, 16, 32          # seq len, batch, embed_size, hidden_size
    D = 2                              # bidirectional

    key = jax.random.PRNGKey(0)
    k = jax.random.split(key, 7)
    bound = 1.0 / np.sqrt(H)           # PyTorch GRU default init range
    embedded = jax.random.normal(k[0], (T, B, E), dtype=jnp.float32)
    hidden0 = 0.1 * jax.random.normal(k[5], (D, B, H), dtype=jnp.float32)
    w_ih = jax.random.uniform(k[1], (D, 3 * H, E), minval=-bound, maxval=bound, dtype=jnp.float32)
    w_hh = jax.random.uniform(k[2], (D, 3 * H, H), minval=-bound, maxval=bound, dtype=jnp.float32)
    b_ih = jax.random.uniform(k[3], (D, 3 * H), minval=-bound, maxval=bound, dtype=jnp.float32)
    b_hh = jax.random.uniform(k[4], (D, 3 * H), minval=-bound, maxval=bound, dtype=jnp.float32)

    # One-time parameter preparation (outside the jitted per-call path).
    params = prepare_gru_params(w_ih, w_hh, b_ih, b_hh)
    params = jax.tree_util.tree_map(jax.block_until_ready, params)

    fwd = jax.jit(encoder_rnn_forward)
    out, hid = fwd(embedded, hidden0, params)
    out = jax.block_until_ready(out)
    hid = jax.block_until_ready(hid)

    # correctness check against pure-JAX reference GRU
    ref_out, ref_hid = encoder_rnn_reference(embedded, hidden0, w_ih, w_hh, b_ih, b_hh)
    assert out.shape == (T, B, D * H) and hid.shape == (1, B, D * H)
    np.testing.assert_allclose(np.asarray(out), np.asarray(ref_out), rtol=1e-5, atol=1e-5)
    np.testing.assert_allclose(np.asarray(hid), np.asarray(ref_hid), rtol=1e-5, atol=1e-5)

    print("KERNEL_OK")
</pallas_src>

<mosaic_0001>
module attributes {stable_mosaic.version = 11 : i64} {
  func.func @bigru_fused_kernel(%arg0: memref<64x16xf32, #tpu.memory_space<vmem>>, %arg1: memref<8x64xf32, #tpu.memory_space<vmem>>, %arg2: memref<16x192xf32, #tpu.memory_space<vmem>>, %arg3: memref<16x192xf32, #tpu.memory_space<vmem>>, %arg4: memref<64x192xf32, #tpu.memory_space<vmem>>, %arg5: memref<1x192xf32, #tpu.memory_space<vmem>>, %arg6: memref<1x64xf32, #tpu.memory_space<vmem>>, %arg7: memref<64x64xf32, #tpu.memory_space<vmem>>, %arg8: memref<8x64xf32, #tpu.memory_space<vmem>>) attributes {dimension_semantics = [], scalar_prefetch = 0 : i64, scratch_operands = 0 : i64, tpu.core_type = #tpu.core_type<tc>} {
    %c0 = arith.constant 0 : index
    %c0_0 = arith.constant 0 : index
    %0 = vector.load %arg0[%c0, %c0_0] : memref<64x16xf32, #tpu.memory_space<vmem>>, vector<64x16xf32>
    %c0_1 = arith.constant 0 : index
    %c0_2 = arith.constant 0 : index
    %1 = vector.load %arg2[%c0_1, %c0_2] : memref<16x192xf32, #tpu.memory_space<vmem>>, vector<16x192xf32>
    %cst = arith.constant dense<0.000000e+00> : vector<64x192xf32>
    %2 = tpu.matmul %0, %1, %cst {dimension_numbers = #tpu.dot_dimension_numbers<[1], [0], [0], [1], [0, 0, 1, 1], [], []>} : vector<64x16xf32>, vector<16x192xf32>, vector<64x192xf32> -> vector<64x192xf32>
    %c0_3 = arith.constant 0 : index
    %c0_4 = arith.constant 0 : index
    %3 = vector.load %arg5[%c0_3, %c0_4] : memref<1x192xf32, #tpu.memory_space<vmem>>, vector<1x192xf32>
    %4 = vector.broadcast %3 : vector<1x192xf32> to vector<64x192xf32>
    %5 = arith.addf %2, %4 : vector<64x192xf32>
    %c0_5 = arith.constant 0 : index
    %c0_6 = arith.constant 0 : index
    %6 = vector.load %arg3[%c0_5, %c0_6] : memref<16x192xf32, #tpu.memory_space<vmem>>, vector<16x192xf32>
    %cst_7 = arith.constant dense<0.000000e+00> : vector<64x192xf32>
    %7 = tpu.matmul %0, %6, %cst_7 {dimension_numbers = #tpu.dot_dimension_numbers<[1], [0], [0], [1], [0, 0, 1, 1], [], []>} : vector<64x16xf32>, vector<16x192xf32>, vector<64x192xf32> -> vector<64x192xf32>
    %c0_8 = arith.constant 0 : index
    %c0_9 = arith.constant 0 : index
    %8 = vector.load %arg4[%c0_8, %c0_9] : memref<64x192xf32, #tpu.memory_space<vmem>>, vector<64x192xf32>
    %c0_10 = arith.constant 0 : index
    %c0_11 = arith.constant 0 : index
    %9 = vector.load %arg6[%c0_10, %c0_11] : memref<1x64xf32, #tpu.memory_space<vmem>>, vector<1x64xf32>
    %10 = vector.shape_cast %9 : vector<1x64xf32> to vector<1x64xf32>
    %11 = vector.broadcast %10 : vector<1x64xf32> to vector<8x64xf32>
    %c0_12 = arith.constant 0 : index
    %c0_13 = arith.constant 0 : index
    %12 = vector.load %arg1[%c0_12, %c0_13] : memref<8x64xf32, #tpu.memory_space<vmem>>, vector<8x64xf32>
    %13 = vector.extract_strided_slice %5 {offsets = [0, 0], sizes = [8, 192], strides = [1, 1]} : vector<64x192xf32> to vector<8x192xf32>
    %14 = vector.extract_strided_slice %7 {offsets = [56, 0], sizes = [8, 192], strides = [1, 1]} : vector<64x192xf32> to vector<8x192xf32>
    %15 = arith.addf %13, %14 : vector<8x192xf32>
    %cst_14 = arith.constant dense<0.000000e+00> : vector<8x192xf32>
    %16 = tpu.matmul %12, %8, %cst_14 {dimension_numbers = #tpu.dot_dimension_numbers<[1], [0], [0], [1], [0, 0, 1, 1], [], []>} : vector<8x64xf32>, vector<64x192xf32>, vector<8x192xf32> -> vector<8x192xf32>
    %17 = vector.extract_strided_slice %15 {offsets = [0, 0], sizes = [8, 64], strides = [1, 1]} : vector<8x192xf32> to vector<8x64xf32>
    %18 = vector.extract_strided_slice %16 {offsets = [0, 0], sizes = [8, 64], strides = [1, 1]} : vector<8x192xf32> to vector<8x64xf32>
    %19 = arith.addf %17, %18 : vector<8x64xf32>
    %20 = arith.negf %19 : vector<8x64xf32>
    %21 = math.exp %20 : vector<8x64xf32>
    %cst_15 = arith.constant 1.000000e+00 : f32
    %22 = vector.broadcast %cst_15 : f32 to vector<8x64xf32>
    %23 = arith.addf %22, %21 : vector<8x64xf32>
    %24 = arith.divf %22, %23 : vector<8x64xf32>
    %25 = vector.extract_strided_slice %15 {offsets = [0, 64], sizes = [8, 64], strides = [1, 1]} : vector<8x192xf32> to vector<8x64xf32>
    %26 = vector.extract_strided_slice %16 {offsets = [0, 64], sizes = [8, 64], strides = [1, 1]} : vector<8x192xf32> to vector<8x64xf32>
    %27 = arith.addf %25, %26 : vector<8x64xf32>
    %28 = arith.negf %27 : vector<8x64xf32>
    %29 = math.exp %28 : vector<8x64xf32>
    %cst_16 = arith.constant 1.000000e+00 : f32
    %30 = vector.broadcast %cst_16 : f32 to vector<8x64xf32>
    %31 = arith.addf %30, %29 : vector<8x64xf32>
    %32 = arith.divf %30, %31 : vector<8x64xf32>
    %33 = vector.extract_strided_slice %15 {offsets = [0, 128], sizes = [8, 64], strides = [1, 1]} : vector<8x192xf32> to vector<8x64xf32>
    %34 = vector.extract_strided_slice %16 {offsets = [0, 128], sizes = [8, 64], strides = [1, 1]} : vector<8x192xf32> to vector<8x64xf32>
    %35 = arith.addf %34, %11 : vector<8x64xf32>
    %36 = arith.mulf %24, %35 : vector<8x64xf32>
    %37 = arith.addf %33, %36 : vector<8x64xf32>
    %38 = math.tanh %37 : vector<8x64xf32>
    %cst_17 = arith.constant 1.000000e+00 : f32
    %39 = vector.broadcast %cst_17 : f32 to vector<8x64xf32>
    %40 = arith.subf %39, %32 : vector<8x64xf32>
    %41 = arith.mulf %40, %38 : vector<8x64xf32>
    %42 = arith.mulf %32, %12 : vector<8x64xf32>
    %43 = arith.addf %41, %42 : vector<8x64xf32>
    %44 = vector.extract_strided_slice %5 {offsets = [8, 0], sizes = [8, 192], strides = [1, 1]} : vector<64x192xf32> to vector<8x192xf32>
    %45 = vector.extract_strided_slice %7 {offsets = [48, 0], sizes = [8, 192], strides = [1, 1]} : vector<64x192xf32> to vector<8x192xf32>
    %46 = arith.addf %44, %45 : vector<8x192xf32>
    %cst_18 = arith.constant dense<0.000000e+00> : vector<8x192xf32>
    %47 = tpu.matmul %43, %8, %cst_18 {dimension_numbers = #tpu.dot_dimension_numbers<[1], [0], [0], [1], [0, 0, 1, 1], [], []>} : vector<8x64xf32>, vector<64x192xf32>, vector<8x192xf32> -> vector<8x192xf32>
    %48 = vector.extract_strided_slice %46 {offsets = [0, 0], sizes = [8, 64], strides = [1, 1]} : vector<8x192xf32> to vector<8x64xf32>
    %49 = vector.extract_strided_slice %47 {offsets = [0, 0], sizes = [8, 64], strides = [1, 1]} : vector<8x192xf32> to vector<8x64xf32>
    %50 = arith.addf %48, %49 : vector<8x64xf32>
    %51 = arith.negf %50 : vector<8x64xf32>
    %52 = math.exp %51 : vector<8x64xf32>
    %cst_19 = arith.constant 1.000000e+00 : f32
    %53 = vector.broadcast %cst_19 : f32 to vector<8x64xf32>
    %54 = arith.addf %53, %52 : vector<8x64xf32>
    %55 = arith.divf %53, %54 : vector<8x64xf32>
    %56 = vector.extract_strided_slice %46 {offsets = [0, 64], sizes = [8, 64], strides = [1, 1]} : vector<8x192xf32> to vector<8x64xf32>
    %57 = vector.extract_strided_slice %47 {offsets = [0, 64], sizes = [8, 64], strides = [1, 1]} : vector<8x192xf32> to vector<8x64xf32>
    %58 = arith.addf %56, %57 : vector<8x64xf32>
    %59 = arith.negf %58 : vector<8x64xf32>
    %60 = math.exp %59 : vector<8x64xf32>
    %cst_20 = arith.constant 1.000000e+00 : f32
    %61 = vector.broadcast %cst_20 : f32 to vector<8x64xf32>
    %62 = arith.addf %61, %60 : vector<8x64xf32>
    %63 = arith.divf %61, %62 : vector<8x64xf32>
    %64 = vector.extract_strided_slice %46 {offsets = [0, 128], sizes = [8, 64], strides = [1, 1]} : vector<8x192xf32> to vector<8x64xf32>
    %65 = vector.extract_strided_slice %47 {offsets = [0, 128], sizes = [8, 64], strides = [1, 1]} : vector<8x192xf32> to vector<8x64xf32>
    %66 = arith.addf %65, %11 : vector<8x64xf32>
    %67 = arith.mulf %55, %66 : vector<8x64xf32>
    %68 = arith.addf %64, %67 : vector<8x64xf32>
    %69 = math.tanh %68 : vector<8x64xf32>
    %cst_21 = arith.constant 1.000000e+00 : f32
    %70 = vector.broadcast %cst_21 : f32 to vector<8x64xf32>
    %71 = arith.subf %70, %63 : vector<8x64xf32>
    %72 = arith.mulf %71, %69 : vector<8x64xf32>
    %73 = arith.mulf %63, %43 : vector<8x64xf32>
    %74 = arith.addf %72, %73 : vector<8x64xf32>
    %75 = vector.extract_strided_slice %5 {offsets = [16, 0], sizes = [8, 192], strides = [1, 1]} : vector<64x192xf32> to vector<8x192xf32>
    %76 = vector.extract_strided_slice %7 {offsets = [40, 0], sizes = [8, 192], strides = [1, 1]} : vector<64x192xf32> to vector<8x192xf32>
    %77 = arith.addf %75, %76 : vector<8x192xf32>
    %cst_22 = arith.constant dense<0.000000e+00> : vector<8x192xf32>
    %78 = tpu.matmul %74, %8, %cst_22 {dimension_numbers = #tpu.dot_dimension_numbers<[1], [0], [0], [1], [0, 0, 1, 1], [], []>} : vector<8x64xf32>, vector<64x192xf32>, vector<8x192xf32> -> vector<8x192xf32>
    %79 = vector.extract_strided_slice %77 {offsets = [0, 0], sizes = [8, 64], strides = [1, 1]} : vector<8x192xf32> to vector<8x64xf32>
    %80 = vector.extract_strided_slice %78 {offsets = [0, 0], sizes = [8, 64], strides = [1, 1]} : vector<8x192xf32> to vector<8x64xf32>
    %81 = arith.addf %79, %80 : vector<8x64xf32>
    %82 = arith.negf %81 : vector<8x64xf32>
    %83 = math.exp %82 : vector<8x64xf32>
    %cst_23 = arith.constant 1.000000e+00 : f32
    %84 = vector.broadcast %cst_23 : f32 to vector<8x64xf32>
    %85 = arith.addf %84, %83 : vector<8x64xf32>
    %86 = arith.divf %84, %85 : vector<8x64xf32>
    %87 = vector.extract_strided_slice %77 {offsets = [0, 64], sizes = [8, 64], strides = [1, 1]} : vector<8x192xf32> to vector<8x64xf32>
    %88 = vector.extract_strided_slice %78 {offsets = [0, 64], sizes = [8, 64], strides = [1, 1]} : vector<8x192xf32> to vector<8x64xf32>
    %89 = arith.addf %87, %88 : vector<8x64xf32>
    %90 = arith.negf %89 : vector<8x64xf32>
    %91 = math.exp %90 : vector<8x64xf32>
    %cst_24 = arith.constant 1.000000e+00 : f32
    %92 = vector.broadcast %cst_24 : f32 to vector<8x64xf32>
    %93 = arith.addf %92, %91 : vector<8x64xf32>
    %94 = arith.divf %92, %93 : vector<8x64xf32>
    %95 = vector.extract_strided_slice %77 {offsets = [0, 128], sizes = [8, 64], strides = [1, 1]} : vector<8x192xf32> to vector<8x64xf32>
    %96 = vector.extract_strided_slice %78 {offsets = [0, 128], sizes = [8, 64], strides = [1, 1]} : vector<8x192xf32> to vector<8x64xf32>
    %97 = arith.addf %96, %11 : vector<8x64xf32>
    %98 = arith.mulf %86, %97 : vector<8x64xf32>
    %99 = arith.addf %95, %98 : vector<8x64xf32>
    %100 = math.tanh %99 : vector<8x64xf32>
    %cst_25 = arith.constant 1.000000e+00 : f32
    %101 = vector.broadcast %cst_25 : f32 to vector<8x64xf32>
    %102 = arith.subf %101, %94 : vector<8x64xf32>
    %103 = arith.mulf %102, %100 : vector<8x64xf32>
    %104 = arith.mulf %94, %74 : vector<8x64xf32>
    %105 = arith.addf %103, %104 : vector<8x64xf32>
    %106 = vector.extract_strided_slice %5 {offsets = [24, 0], sizes = [8, 192], strides = [1, 1]} : vector<64x192xf32> to vector<8x192xf32>
    %107 = vector.extract_strided_slice %7 {offsets = [32, 0], sizes = [8, 192], strides = [1, 1]} : vector<64x192xf32> to vector<8x192xf32>
    %108 = arith.addf %106, %107 : vector<8x192xf32>
    %cst_26 = arith.constant dense<0.000000e+00> : vector<8x192xf32>
    %109 = tpu.matmul %105, %8, %cst_26 {dimension_numbers = #tpu.dot_dimension_numbers<[1], [0], [0], [1], [0, 0, 1, 1], [], []>} : vector<8x64xf32>, vector<64x192xf32>, vector<8x192xf32> -> vector<8x192xf32>
    %110 = vector.extract_strided_slice %108 {offsets = [0, 0], sizes = [8, 64], strides = [1, 1]} : vector<8x192xf32> to vector<8x64xf32>
    %111 = vector.extract_strided_slice %109 {offsets = [0, 0], sizes = [8, 64], strides = [1, 1]} : vector<8x192xf32> to vector<8x64xf32>
    %112 = arith.addf %110, %111 : vector<8x64xf32>
    %113 = arith.negf %112 : vector<8x64xf32>
    %114 = math.exp %113 : vector<8x64xf32>
    %cst_27 = arith.constant 1.000000e+00 : f32
    %115 = vector.broadcast %cst_27 : f32 to vector<8x64xf32>
    %116 = arith.addf %115, %114 : vector<8x64xf32>
    %117 = arith.divf %115, %116 : vector<8x64xf32>
    %118 = vector.extract_strided_slice %108 {offsets = [0, 64], sizes = [8, 64], strides = [1, 1]} : vector<8x192xf32> to vector<8x64xf32>
    %119 = vector.extract_strided_slice %109 {offsets = [0, 64], sizes = [8, 64], strides = [1, 1]} : vector<8x192xf32> to vector<8x64xf32>
    %120 = arith.addf %118, %119 : vector<8x64xf32>
    %121 = arith.negf %120 : vector<8x64xf32>
    %122 = math.exp %121 : vector<8x64xf32>
    %cst_28 = arith.constant 1.000000e+00 : f32
    %123 = vector.broadcast %cst_28 : f32 to vector<8x64xf32>
    %124 = arith.addf %123, %122 : vector<8x64xf32>
    %125 = arith.divf %123, %124 : vector<8x64xf32>
    %126 = vector.extract_strided_slice %108 {offsets = [0, 128], sizes = [8, 64], strides = [1, 1]} : vector<8x192xf32> to vector<8x64xf32>
    %127 = vector.extract_strided_slice %109 {offsets = [0, 128], sizes = [8, 64], strides = [1, 1]} : vector<8x192xf32> to vector<8x64xf32>
    %128 = arith.addf %127, %11 : vector<8x64xf32>
    %129 = arith.mulf %117, %128 : vector<8x64xf32>
    %130 = arith.addf %126, %129 : vector<8x64xf32>
    %131 = math.tanh %130 : vector<8x64xf32>
    %cst_29 = arith.constant 1.000000e+00 : f32
    %132 = vector.broadcast %cst_29 : f32 to vector<8x64xf32>
    %133 = arith.subf %132, %125 : vector<8x64xf32>
    %134 = arith.mulf %133, %131 : vector<8x64xf32>
    %135 = arith.mulf %125, %105 : vector<8x64xf32>
    %136 = arith.addf %134, %135 : vector<8x64xf32>
    %137 = vector.extract_strided_slice %5 {offsets = [32, 0], sizes = [8, 192], strides = [1, 1]} : vector<64x192xf32> to vector<8x192xf32>
    %138 = vector.extract_strided_slice %7 {offsets = [24, 0], sizes = [8, 192], strides = [1, 1]} : vector<64x192xf32> to vector<8x192xf32>
    %139 = arith.addf %137, %138 : vector<8x192xf32>
    %cst_30 = arith.constant dense<0.000000e+00> : vector<8x192xf32>
    %140 = tpu.matmul %136, %8, %cst_30 {dimension_numbers = #tpu.dot_dimension_numbers<[1], [0], [0], [1], [0, 0, 1, 1], [], []>} : vector<8x64xf32>, vector<64x192xf32>, vector<8x192xf32> -> vector<8x192xf32>
    %141 = vector.extract_strided_slice %139 {offsets = [0, 0], sizes = [8, 64], strides = [1, 1]} : vector<8x192xf32> to vector<8x64xf32>
    %142 = vector.extract_strided_slice %140 {offsets = [0, 0], sizes = [8, 64], strides = [1, 1]} : vector<8x192xf32> to vector<8x64xf32>
    %143 = arith.addf %141, %142 : vector<8x64xf32>
    %144 = arith.negf %143 : vector<8x64xf32>
    %145 = math.exp %144 : vector<8x64xf32>
    %cst_31 = arith.constant 1.000000e+00 : f32
    %146 = vector.broadcast %cst_31 : f32 to vector<8x64xf32>
    %147 = arith.addf %146, %145 : vector<8x64xf32>
    %148 = arith.divf %146, %147 : vector<8x64xf32>
    %149 = vector.extract_strided_slice %139 {offsets = [0, 64], sizes = [8, 64], strides = [1, 1]} : vector<8x192xf32> to vector<8x64xf32>
    %150 = vector.extract_strided_slice %140 {offsets = [0, 64], sizes = [8, 64], strides = [1, 1]} : vector<8x192xf32> to vector<8x64xf32>
    %151 = arith.addf %149, %150 : vector<8x64xf32>
    %152 = arith.negf %151 : vector<8x64xf32>
    %153 = math.exp %152 : vector<8x64xf32>
    %cst_32 = arith.constant 1.000000e+00 : f32
    %154 = vector.broadcast %cst_32 : f32 to vector<8x64xf32>
    %155 = arith.addf %154, %153 : vector<8x64xf32>
    %156 = arith.divf %154, %155 : vector<8x64xf32>
    %157 = vector.extract_strided_slice %139 {offsets = [0, 128], sizes = [8, 64], strides = [1, 1]} : vector<8x192xf32> to vector<8x64xf32>
    %158 = vector.extract_strided_slice %140 {offsets = [0, 128], sizes = [8, 64], strides = [1, 1]} : vector<8x192xf32> to vector<8x64xf32>
    %159 = arith.addf %158, %11 : vector<8x64xf32>
    %160 = arith.mulf %148, %159 : vector<8x64xf32>
    %161 = arith.addf %157, %160 : vector<8x64xf32>
    %162 = math.tanh %161 : vector<8x64xf32>
    %cst_33 = arith.constant 1.000000e+00 : f32
    %163 = vector.broadcast %cst_33 : f32 to vector<8x64xf32>
    %164 = arith.subf %163, %156 : vector<8x64xf32>
    %165 = arith.mulf %164, %162 : vector<8x64xf32>
    %166 = arith.mulf %156, %136 : vector<8x64xf32>
    %167 = arith.addf %165, %166 : vector<8x64xf32>
    %168 = vector.extract_strided_slice %5 {offsets = [40, 0], sizes = [8, 192], strides = [1, 1]} : vector<64x192xf32> to vector<8x192xf32>
    %169 = vector.extract_strided_slice %7 {offsets = [16, 0], sizes = [8, 192], strides = [1, 1]} : vector<64x192xf32> to vector<8x192xf32>
    %170 = arith.addf %168, %169 : vector<8x192xf32>
    %cst_34 = arith.constant dense<0.000000e+00> : vector<8x192xf32>
    %171 = tpu.matmul %167, %8, %cst_34 {dimension_numbers = #tpu.dot_dimension_numbers<[1], [0], [0], [1], [0, 0, 1, 1], [], []>} : vector<8x64xf32>, vector<64x192xf32>, vector<8x192xf32> -> vector<8x192xf32>
    %172 = vector.extract_strided_slice %170 {offsets = [0, 0], sizes = [8, 64], strides = [1, 1]} : vector<8x192xf32> to vector<8x64xf32>
    %173 = vector.extract_strided_slice %171 {offsets = [0, 0], sizes = [8, 64], strides = [1, 1]} : vector<8x192xf32> to vector<8x64xf32>
    %174 = arith.addf %172, %173 : vector<8x64xf32>
    %175 = arith.negf %174 : vector<8x64xf32>
    %176 = math.exp %175 : vector<8x64xf32>
    %cst_35 = arith.constant 1.000000e+00 : f32
    %177 = vector.broadcast %cst_35 : f32 to vector<8x64xf32>
    %178 = arith.addf %177, %176 : vector<8x64xf32>
    %179 = arith.divf %177, %178 : vector<8x64xf32>
    %180 = vector.extract_strided_slice %170 {offsets = [0, 64], sizes = [8, 64], strides = [1, 1]} : vector<8x192xf32> to vector<8x64xf32>
    %181 = vector.extract_strided_slice %171 {offsets = [0, 64], sizes = [8, 64], strides = [1, 1]} : vector<8x192xf32> to vector<8x64xf32>
    %182 = arith.addf %180, %181 : vector<8x64xf32>
    %183 = arith.negf %182 : vector<8x64xf32>
    %184 = math.exp %183 : vector<8x64xf32>
    %cst_36 = arith.constant 1.000000e+00 : f32
    %185 = vector.broadcast %cst_36 : f32 to vector<8x64xf32>
    %186 = arith.addf %185, %184 : vector<8x64xf32>
    %187 = arith.divf %185, %186 : vector<8x64xf32>
    %188 = vector.extract_strided_slice %170 {offsets = [0, 128], sizes = [8, 64], strides = [1, 1]} : vector<8x192xf32> to vector<8x64xf32>
    %189 = vector.extract_strided_slice %171 {offsets = [0, 128], sizes = [8, 64], strides = [1, 1]} : vector<8x192xf32> to vector<8x64xf32>
    %190 = arith.addf %189, %11 : vector<8x64xf32>
    %191 = arith.mulf %179, %190 : vector<8x64xf32>
    %192 = arith.addf %188, %191 : vector<8x64xf32>
    %193 = math.tanh %192 : vector<8x64xf32>
    %cst_37 = arith.constant 1.000000e+00 : f32
    %194 = vector.broadcast %cst_37 : f32 to vector<8x64xf32>
    %195 = arith.subf %194, %187 : vector<8x64xf32>
    %196 = arith.mulf %195, %193 : vector<8x64xf32>
    %197 = arith.mulf %187, %167 : vector<8x64xf32>
    %198 = arith.addf %196, %197 : vector<8x64xf32>
    %199 = vector.extract_strided_slice %5 {offsets = [48, 0], sizes = [8, 192], strides = [1, 1]} : vector<64x192xf32> to vector<8x192xf32>
    %200 = vector.extract_strided_slice %7 {offsets = [8, 0], sizes = [8, 192], strides = [1, 1]} : vector<64x192xf32> to vector<8x192xf32>
    %201 = arith.addf %199, %200 : vector<8x192xf32>
    %cst_38 = arith.constant dense<0.000000e+00> : vector<8x192xf32>
    %202 = tpu.matmul %198, %8, %cst_38 {dimension_numbers = #tpu.dot_dimension_numbers<[1], [0], [0], [1], [0, 0, 1, 1], [], []>} : vector<8x64xf32>, vector<64x192xf32>, vector<8x192xf32> -> vector<8x192xf32>
    %203 = vector.extract_strided_slice %201 {offsets = [0, 0], sizes = [8, 64], strides = [1, 1]} : vector<8x192xf32> to vector<8x64xf32>
    %204 = vector.extract_strided_slice %202 {offsets = [0, 0], sizes = [8, 64], strides = [1, 1]} : vector<8x192xf32> to vector<8x64xf32>
    %205 = arith.addf %203, %204 : vector<8x64xf32>
    %206 = arith.negf %205 : vector<8x64xf32>
    %207 = math.exp %206 : vector<8x64xf32>
    %cst_39 = arith.constant 1.000000e+00 : f32
    %208 = vector.broadcast %cst_39 : f32 to vector<8x64xf32>
    %209 = arith.addf %208, %207 : vector<8x64xf32>
    %210 = arith.divf %208, %209 : vector<8x64xf32>
    %211 = vector.extract_strided_slice %201 {offsets = [0, 64], sizes = [8, 64], strides = [1, 1]} : vector<8x192xf32> to vector<8x64xf32>
    %212 = vector.extract_strided_slice %202 {offsets = [0, 64], sizes = [8, 64], strides = [1, 1]} : vector<8x192xf32> to vector<8x64xf32>
    %213 = arith.addf %211, %212 : vector<8x64xf32>
    %214 = arith.negf %213 : vector<8x64xf32>
    %215 = math.exp %214 : vector<8x64xf32>
    %cst_40 = arith.constant 1.000000e+00 : f32
    %216 = vector.broadcast %cst_40 : f32 to vector<8x64xf32>
    %217 = arith.addf %216, %215 : vector<8x64xf32>
    %218 = arith.divf %216, %217 : vector<8x64xf32>
    %219 = vector.extract_strided_slice %201 {offsets = [0, 128], sizes = [8, 64], strides = [1, 1]} : vector<8x192xf32> to vector<8x64xf32>
    %220 = vector.extract_strided_slice %202 {offsets = [0, 128], sizes = [8, 64], strides = [1, 1]} : vector<8x192xf32> to vector<8x64xf32>
    %221 = arith.addf %220, %11 : vector<8x64xf32>
    %222 = arith.mulf %210, %221 : vector<8x64xf32>
    %223 = arith.addf %219, %222 : vector<8x64xf32>
    %224 = math.tanh %223 : vector<8x64xf32>
    %cst_41 = arith.constant 1.000000e+00 : f32
    %225 = vector.broadcast %cst_41 : f32 to vector<8x64xf32>
    %226 = arith.subf %225, %218 : vector<8x64xf32>
    %227 = arith.mulf %226, %224 : vector<8x64xf32>
    %228 = arith.mulf %218, %198 : vector<8x64xf32>
    %229 = arith.addf %227, %228 : vector<8x64xf32>
    %230 = vector.extract_strided_slice %5 {offsets = [56, 0], sizes = [8, 192], strides = [1, 1]} : vector<64x192xf32> to vector<8x192xf32>
    %231 = vector.extract_strided_slice %7 {offsets = [0, 0], sizes = [8, 192], strides = [1, 1]} : vector<64x192xf32> to vector<8x192xf32>
    %232 = arith.addf %230, %231 : vector<8x192xf32>
    %cst_42 = arith.constant dense<0.000000e+00> : vector<8x192xf32>
    %233 = tpu.matmul %229, %8, %cst_42 {dimension_numbers = #tpu.dot_dimension_numbers<[1], [0], [0], [1], [0, 0, 1, 1], [], []>} : vector<8x64xf32>, vector<64x192xf32>, vector<8x192xf32> -> vector<8x192xf32>
    %234 = vector.extract_strided_slice %232 {offsets = [0, 0], sizes = [8, 64], strides = [1, 1]} : vector<8x192xf32> to vector<8x64xf32>
    %235 = vector.extract_strided_slice %233 {offsets = [0, 0], sizes = [8, 64], strides = [1, 1]} : vector<8x192xf32> to vector<8x64xf32>
    %236 = arith.addf %234, %235 : vector<8x64xf32>
    %237 = arith.negf %236 : vector<8x64xf32>
    %238 = math.exp %237 : vector<8x64xf32>
    %cst_43 = arith.constant 1.000000e+00 : f32
    %239 = vector.broadcast %cst_43 : f32 to vector<8x64xf32>
    %240 = arith.addf %239, %238 : vector<8x64xf32>
    %241 = arith.divf %239, %240 : vector<8x64xf32>
    %242 = vector.extract_strided_slice %232 {offsets = [0, 64], sizes = [8, 64], strides = [1, 1]} : vector<8x192xf32> to vector<8x64xf32>
    %243 = vector.extract_strided_slice %233 {offsets = [0, 64], sizes = [8, 64], strides = [1, 1]} : vector<8x192xf32> to vector<8x64xf32>
    %244 = arith.addf %242, %243 : vector<8x64xf32>
    %245 = arith.negf %244 : vector<8x64xf32>
    %246 = math.exp %245 : vector<8x64xf32>
    %cst_44 = arith.constant 1.000000e+00 : f32
    %247 = vector.broadcast %cst_44 : f32 to vector<8x64xf32>
    %248 = arith.addf %247, %246 : vector<8x64xf32>
    %249 = arith.divf %247, %248 : vector<8x64xf32>
    %250 = vector.extract_strided_slice %232 {offsets = [0, 128], sizes = [8, 64], strides = [1, 1]} : vector<8x192xf32> to vector<8x64xf32>
    %251 = vector.extract_strided_slice %233 {offsets = [0, 128], sizes = [8, 64], strides = [1, 1]} : vector<8x192xf32> to vector<8x64xf32>
    %252 = arith.addf %251, %11 : vector<8x64xf32>
    %253 = arith.mulf %241, %252 : vector<8x64xf32>
    %254 = arith.addf %250, %253 : vector<8x64xf32>
    %255 = math.tanh %254 : vector<8x64xf32>
    %cst_45 = arith.constant 1.000000e+00 : f32
    %256 = vector.broadcast %cst_45 : f32 to vector<8x64xf32>
    %257 = arith.subf %256, %249 : vector<8x64xf32>
    %258 = arith.mulf %257, %255 : vector<8x64xf32>
    %259 = arith.mulf %249, %229 : vector<8x64xf32>
    %260 = arith.addf %258, %259 : vector<8x64xf32>
    %261 = vector.extract_strided_slice %43 {offsets = [0, 0], sizes = [8, 32], strides = [1, 1]} : vector<8x64xf32> to vector<8x32xf32>
    %262 = vector.extract_strided_slice %74 {offsets = [0, 0], sizes = [8, 32], strides = [1, 1]} : vector<8x64xf32> to vector<8x32xf32>
    %263 = vector.extract_strided_slice %105 {offsets = [0, 0], sizes = [8, 32], strides = [1, 1]} : vector<8x64xf32> to vector<8x32xf32>
    %264 = vector.extract_strided_slice %136 {offsets = [0, 0], sizes = [8, 32], strides = [1, 1]} : vector<8x64xf32> to vector<8x32xf32>
    %265 = vector.extract_strided_slice %167 {offsets = [0, 0], sizes = [8, 32], strides = [1, 1]} : vector<8x64xf32> to vector<8x32xf32>
    %266 = vector.extract_strided_slice %198 {offsets = [0, 0], sizes = [8, 32], strides = [1, 1]} : vector<8x64xf32> to vector<8x32xf32>
    %267 = vector.extract_strided_slice %229 {offsets = [0, 0], sizes = [8, 32], strides = [1, 1]} : vector<8x64xf32> to vector<8x32xf32>
    %268 = vector.extract_strided_slice %260 {offsets = [0, 0], sizes = [8, 32], strides = [1, 1]} : vector<8x64xf32> to vector<8x32xf32>
    %269 = tpu.concatenate %261, %262, %263, %264, %265, %266, %267, %268 in 0 : vector<8x32xf32>, vector<8x32xf32>, vector<8x32xf32>, vector<8x32xf32>, vector<8x32xf32>, vector<8x32xf32>, vector<8x32xf32>, vector<8x32xf32> -> vector<64x32xf32>
    %270 = vector.extract_strided_slice %260 {offsets = [0, 32], sizes = [8, 32], strides = [1, 1]} : vector<8x64xf32> to vector<8x32xf32>
    %271 = vector.extract_strided_slice %229 {offsets = [0, 32], sizes = [8, 32], strides = [1, 1]} : vector<8x64xf32> to vector<8x32xf32>
    %272 = vector.extract_strided_slice %198 {offsets = [0, 32], sizes = [8, 32], strides = [1, 1]} : vector<8x64xf32> to vector<8x32xf32>
    %273 = vector.extract_strided_slice %167 {offsets = [0, 32], sizes = [8, 32], strides = [1, 1]} : vector<8x64xf32> to vector<8x32xf32>
    %274 = vector.extract_strided_slice %136 {offsets = [0, 32], sizes = [8, 32], strides = [1, 1]} : vector<8x64xf32> to vector<8x32xf32>
    %275 = vector.extract_strided_slice %105 {offsets = [0, 32], sizes = [8, 32], strides = [1, 1]} : vector<8x64xf32> to vector<8x32xf32>
    %276 = vector.extract_strided_slice %74 {offsets = [0, 32], sizes = [8, 32], strides = [1, 1]} : vector<8x64xf32> to vector<8x32xf32>
    %277 = vector.extract_strided_slice %43 {offsets = [0, 32], sizes = [8, 32], strides = [1, 1]} : vector<8x64xf32> to vector<8x32xf32>
    %278 = tpu.concatenate %270, %271, %272, %273, %274, %275, %276, %277 in 0 : vector<8x32xf32>, vector<8x32xf32>, vector<8x32xf32>, vector<8x32xf32>, vector<8x32xf32>, vector<8x32xf32>, vector<8x32xf32>, vector<8x32xf32> -> vector<64x32xf32>
    %279 = tpu.concatenate %269, %278 in 1 : vector<64x32xf32>, vector<64x32xf32> -> vector<64x64xf32>
    %c0_46 = arith.constant 0 : index
    %c0_47 = arith.constant 0 : index
    %280 = vector.load %arg7[%c0_46, %c0_47] : memref<64x64xf32, #tpu.memory_space<vmem>>, vector<64x64xf32>
    tpu.vector_store %arg7[%c0_46, %c0_47], %279 {strides = array<i32>} : memref<64x64xf32, #tpu.memory_space<vmem>>, vector<64x64xf32>,
    %c0_48 = arith.constant 0 : index
    %c0_49 = arith.constant 0 : index
    %281 = vector.load %arg8[%c0_48, %c0_49] : memref<8x64xf32, #tpu.memory_space<vmem>>, vector<8x64xf32>
    tpu.vector_store %arg8[%c0_48, %c0_49], %260 {strides = array<i32>} : memref<8x64xf32, #tpu.memory_space<vmem>>, vector<8x64xf32>,
    return
  }
}

</mosaic_0001>

<llo_original>
// kernel: encoder_rnn_forward.1
$region0: #{encoder_rnn_forward.1}
  #allocation0 [shape = 'u32[]', space=smem, size = 0x4, offset = 0x4, fixed_abs, tag = 'smem constant byte address 0x4 - core index']
  #allocation1 [shape = 'u32[144,128]{1,0:T(1,128)}', space=vmem, size = 0x12000, scoped, tag = 'internal scratch']
  %s0 = inlined_call_operand.vmem [shape: f32[64,16], index: 0, kind: input, shape index: {}]
  %s1 = inlined_call_operand.vmem [shape: f32[8,64], index: 1, kind: input, shape index: {}]
  %s2 = inlined_call_operand.vmem [shape: f32[16,192], index: 2, kind: input, shape index: {}]
  %s3 = inlined_call_operand.vmem [shape: f32[16,192], index: 3, kind: input, shape index: {}]
  %s4 = inlined_call_operand.hbm [shape: f32[64,192], index: 4, kind: input, shape index: {}]
  %s5 = inlined_call_operand.vmem [shape: f32[1,192], index: 5, kind: input, shape index: {}]
  %s6 = inlined_call_operand.vmem [shape: f32[1,64], index: 6, kind: input, shape index: {}]
  %s7 = inlined_call_operand.vmem [shape: f32[64,64], index: 7, kind: output, shape index: {0}]
  %s8 = inlined_call_operand.vmem [shape: f32[8,64], index: 8, kind: output, shape index: {1}]
  %9 = xla_tuple %s7, %s8
  %s10 = sld [smem:[#allocation0]]
  $region50: #{encoder_rnn_forward.1} parent=0
    _
  %s12 = ssub.s32 1, %s10
  %s13 = scalar_select 0, %s12, %s10
  $region1: #{encoder_rnn_forward.1} parent=0
    #allocation2 [shape = 'u8[65536]{0}', space=vmem, size = 0x10000, scoped, tag = 'input window, operand 4, single buffered']
    #allocation3 [shape = 's32[1]{0}', space=sflag, size = 0x4, scoped, tag = 'scoped memory for encoder_rnn_forward.1']
    %14 = vsyncpa [#allocation3], 0
    // Predicated region
    $region2: #{encoder_rnn_forward.1} parent=1 // pred_check
      _
    $region3: #{encoder_rnn_forward.1} parent=1 // pred_check_branch
      %16 = sbr.rel (0) target = $region5
    $region4: #{encoder_rnn_forward.1} parent=1 // pred_region
      _
    $region5: #{encoder_rnn_forward.1} parent=1 // pred_fallthru
      _
    // Predicated region
    $region6: #{encoder_rnn_forward.1} parent=1 // pred_check
      _
    $region7: #{encoder_rnn_forward.1} parent=1 // pred_check_branch
      %18 = sbr.rel (0) target = $region9
    $region8: #{encoder_rnn_forward.1} parent=1 // pred_region
      _
    $region9: #{encoder_rnn_forward.1} parent=1 // pred_fallthru
      _
    // Predicated region
    $region10: #{encoder_rnn_forward.1} parent=1 // pred_check
      _
    $region11: #{encoder_rnn_forward.1} parent=1 // pred_check_branch
      %20 = sbr.rel (0) target = $region13
    $region12: #{encoder_rnn_forward.1} parent=1 // pred_region
      _
    $region13: #{encoder_rnn_forward.1} parent=1 // pred_fallthru
      _
    // Predicated region
    $region14: #{encoder_rnn_forward.1} parent=1 // pred_check
      _
    $region15: #{encoder_rnn_forward.1} parent=1 // pred_check_branch
      %22 = sbr.rel (0) target = $region17
    $region16: #{encoder_rnn_forward.1} parent=1 // pred_region
      _
    $region17: #{encoder_rnn_forward.1} parent=1 // pred_fallthru
      _
    // Predicated region
    $region18: #{encoder_rnn_forward.1} parent=1 // pred_check
      _
    $region19: #{encoder_rnn_forward.1} parent=1 // pred_check_branch
      %24 = sbr.rel (0) target = $region21
    $region20: #{encoder_rnn_forward.1} parent=1 // pred_region
      %s26 = ssub.s32 2048, 2048
      %27 = vsyncadd [#allocation3], %s26
      %s28 = sshll.u32 [#allocation2], 4
      %s29 = int_to_ptr.vmem [resolvable:$true] %s28
      %34 = dma.hbm_to_vmem [thread:$0]  %s4, 2048, %s29, [#allocation3], 256, 256, 16
    $region21: #{encoder_rnn_forward.1} parent=1 // pred_fallthru
      _
    // Predicated region
    $region22: #{encoder_rnn_forward.1} parent=1 // pred_check
      _
    $region23: #{encoder_rnn_forward.1} parent=1 // pred_check_branch
      %36 = sbr.rel (0) target = $region25
    $region24: #{encoder_rnn_forward.1} parent=1 // pred_region
      _
    $region25: #{encoder_rnn_forward.1} parent=1 // pred_fallthru
      _
    // Predicated region
    $region26: #{encoder_rnn_forward.1} parent=1 // pred_check
      _
    $region27: #{encoder_rnn_forward.1} parent=1 // pred_check_branch
      %38 = sbr.rel (0) target = $region29
    $region28: #{encoder_rnn_forward.1} parent=1 // pred_region
      _
    $region29: #{encoder_rnn_forward.1} parent=1 // pred_fallthru
      _
    // Predicated region
    $region30: #{encoder_rnn_forward.1} parent=1 // pred_check
      _
    $region31: #{encoder_rnn_forward.1} parent=1 // pred_check_branch
      %40 = sbr.rel (0) target = $region33
    $region32: #{encoder_rnn_forward.1} parent=1 // pred_region
      %41 = dma.done [#allocation3], 2048
    $region33: #{encoder_rnn_forward.1} parent=1 // pred_fallthru
      _
    %v42 = vld [vmem:[%s0] sm:$0xff]
    %v43 = vld [vmem:[%s0 + $0x8] sm:$0xff]
    %v44 = vld [vmem:[%s0 + $0x10] sm:$0xff]
    %v45 = vld [vmem:[%s0 + $0x18] sm:$0xff]
    %v46 = vld [vmem:[%s0 + $0x20] sm:$0xff]
    %v47 = vld [vmem:[%s0 + $0x28] sm:$0xff]
    %v48 = vld [vmem:[%s0 + $0x30] sm:$0xff]
    %v49 = vld [vmem:[%s0 + $0x38] sm:$0xff]
    %v50 = vld [vmem:[%s2] sm:$0xff]
    %v51 = vld [vmem:[%s2 + $0x8] sm:$0xff]
    %v52 = vld [vmem:[%s2 + $0x10] sm:$0xff]
    %v53 = vld [vmem:[%s2 + $0x18] sm:$0xff]
    %v54 = vld [vmem:[%s5] sm:$0x3]
    %v56 = vlaneseq
    %v57 = vshrl.u32 %v56, 7
    %v58 = vsub.s32 0, %v57
    %v59 = vrot.slane %v54, %v58
    %v60 = vlaneseq
    %v61 = vshrl.u32 %v60, 7
    %v62 = vsub.s32 1, %v61
    %v63 = vrot.slane %v54, %v62
    %vm66 = vcmask 130048
    %v68 = vsel %vm66, %v42, 0
    %v71 = vsel %vm66, %v43, 0
    %v74 = vsel %vm66, %v44, 0
    %v77 = vsel %vm66, %v45, 0
    %v80 = vsel %vm66, %v46, 0
    %v83 = vsel %vm66, %v47, 0
    %v86 = vsel %vm66, %v48, 0
    %v89 = vsel %vm66, %v49, 0
    %91 = vmatprep.subr.mxu0 0.0
    %92 = vmatpush1.msra.mxu0 0.0
    %93 = vmatprep.subr.mxu0 0.0
    %94 = vmatpush1.msra.mxu0 0.0
    %95 = vmatprep.subr.mxu0 0.0
    %96 = vmatpush1.msra.mxu0 0.0
    %97 = vmatprep.subr.mxu0 0.0
    %98 = vmatpush1.msra.mxu0 0.0
    %99 = vmatprep.subr.mxu0 0.0
    %100 = vmatpush1.msra.mxu0 0.0
    %101 = vmatprep.subr.mxu0 0.0
    %102 = vmatpush1.msra.mxu0 0.0
    %103 = vmatprep.subr.mxu0 0.0
    %104 = vmatpush1.msra.mxu0 0.0
    %105 = vmatprep.subr.mxu0 0.0
    %106 = vmatpush1.msra.mxu0 0.0
    %107 = vmatprep.subr.mxu0 0.0
    %108 = vmatpush1.msra.mxu0 0.0
    %109 = vmatprep.subr.mxu0 0.0
    %110 = vmatpush1.msra.mxu0 0.0
    %111 = vmatprep.subr.mxu0 0.0
    %112 = vmatpush1.msra.mxu0 0.0
    %113 = vmatprep.subr.mxu0 0.0
    %114 = vmatpush1.msra.mxu0 0.0
    %115 = vmatprep.subr.mxu0 0.0
    %116 = vmatpush1.msra.mxu0 0.0
    %117 = vmatprep.subr.mxu0 0.0
    %118 = vmatpush1.msra.mxu0 0.0
    %119 = vmatprep.subr.mxu0 %v53
    %120 = vmatpush1.msra.mxu0 %v52
    %121 = vmatprep.subr.mxu0 %v51
    %122 = vmatpush1.msra.mxu0 %v50
    %123 = vmatprep.subr.mxu0 0.0
    %124 = vmatpush2.msra.mxu0 0.0
    %125 = vmatprep.subr.mxu0 0.0
    %126 = vmatpush2.msra.mxu0 0.0
    %127 = vmatprep.subr.mxu0 0.0
    %128 = vmatpush2.msra.mxu0 0.0
    %129 = vmatprep.subr.mxu0 0.0
    %130 = vmatpush2.msra.mxu0 0.0
    %131 = vmatprep.subr.mxu0 0.0
    %132 = vmatpush2.msra.mxu0 0.0
    %133 = vmatprep.subr.mxu0 0.0
    %134 = vmatpush2.msra.mxu0 0.0
    %135 = vmatprep.subr.mxu0 0.0
    %136 = vmatpush2.msra.mxu0 0.0
    %137 = vmatprep.subr.mxu0 0.0
    %138 = vmatpush2.msra.mxu0 0.0
    %139 = vmatprep.subr.mxu0 0.0
    %140 = vmatpush2.msra.mxu0 0.0
    %141 = vmatprep.subr.mxu0 0.0
    %142 = vmatpush2.msra.mxu0 0.0
    %143 = vmatprep.subr.mxu0 0.0
    %144 = vmatpush2.msra.mxu0 0.0
    %145 = vmatprep.subr.mxu0 0.0
    %146 = vmatpush2.msra.mxu0 0.0
    %147 = vmatprep.subr.mxu0 0.0
    %148 = vmatpush2.msra.mxu0 0.0
    %149 = vmatprep.subr.mxu0 0.0
    %150 = vmatpush2.msra.mxu0 0.0
    %151 = vmatprep.subr.mxu0 0.0
    %152 = vmatpush2.msra.mxu0 0.0
    %153 = vmatprep.subr.mxu0 0.0
    %154 = vmatpush2.msra.mxu0 0.0
    %155 = vmatprep.mubr.f32.mxu0 0.0
    %156 = vmatmul.mubr.f32.gmra.mxu0 %v68
    %v157 = vpop.f32.mrf.mxu0
    %v158 = vadd.f32 %v59, %v157
    %v159 = vpop.f32.mrf.mxu0
    %v160 = vadd.f32 %v63, %v159
    %161 = vmatprep.mubr.f32.mxu0 0.0
    %162 = vmatmul.mubr.f32.gmra.mxu0 %v71
    %v163 = vpop.f32.mrf.mxu0
    %v164 = vadd.f32 %v59, %v163
    %v165 = vpop.f32.mrf.mxu0
    %v166 = vadd.f32 %v63, %v165
    %167 = vmatprep.mubr.f32.mxu0 0.0
    %168 = vmatmul.mubr.f32.gmra.mxu0 %v74
    %v169 = vpop.f32.mrf.mxu0
    %v170 = vadd.f32 %v59, %v169
    %v171 = vpop.f32.mrf.mxu0
    %v172 = vadd.f32 %v63, %v171
    %173 = vmatprep.mubr.f32.mxu0 0.0
    %174 = vmatmul.mubr.f32.gmra.mxu0 %v77
    %v175 = vpop.f32.mrf.mxu0
    %v176 = vadd.f32 %v59, %v175
    %v177 = vpop.f32.mrf.mxu0
    %v178 = vadd.f32 %v63, %v177
    %179 = vmatprep.mubr.f32.mxu0 0.0
    %180 = vmatmul.mubr.f32.gmra.mxu0 %v80
    %v181 = vpop.f32.mrf.mxu0
    %v182 = vadd.f32 %v59, %v181
    %v183 = vpop.f32.mrf.mxu0
    %v184 = vadd.f32 %v63, %v183
    %185 = vmatprep.mubr.f32.mxu0 0.0
    %186 = vmatmul.mubr.f32.gmra.mxu0 %v83
    %v187 = vpop.f32.mrf.mxu0
    %v188 = vadd.f32 %v59, %v187
    %v189 = vpop.f32.mrf.mxu0
    %v190 = vadd.f32 %v63, %v189
    %191 = vmatprep.mubr.f32.mxu0 0.0
    %192 = vmatmul.mubr.f32.gmra.mxu0 %v86
    %v193 = vpop.f32.mrf.mxu0
    %v194 = vadd.f32 %v59, %v193
    %v195 = vpop.f32.mrf.mxu0
    %v196 = vadd.f32 %v63, %v195
    %197 = vmatprep.mubr.f32.mxu0 0.0
    %198 = vmatmul.mubr.f32.gmra.mxu0 %v89
    %v199 = vpop.f32.mrf.mxu0
    %v200 = vadd.f32 %v59, %v199
    %v201 = vpop.f32.mrf.mxu0
    %v202 = vadd.f32 %v63, %v201
    %203 = vdwg.mxu0
    %v204 = vld [vmem:[%s3] sm:$0xff]
    %v205 = vld [vmem:[%s3 + $0x8] sm:$0xff]
    %v206 = vld [vmem:[%s3 + $0x10] sm:$0xff]
    %v207 = vld [vmem:[%s3 + $0x18] sm:$0xff]
    %208 = vmatprep.subr.mxu0 0.0
    %209 = vmatpush1.msra.mxu0 0.0
    %210 = vmatprep.subr.mxu0 0.0
    %211 = vmatpush1.msra.mxu0 0.0
    %212 = vmatprep.subr.mxu0 0.0
    %213 = vmatpush1.msra.mxu0 0.0
    %214 = vmatprep.subr.mxu0 0.0
    %215 = vmatpush1.msra.mxu0 0.0
    %216 = vmatprep.subr.mxu0 0.0
    %217 = vmatpush1.msra.mxu0 0.0
    %218 = vmatprep.subr.mxu0 0.0
    %219 = vmatpush1.msra.mxu0 0.0
    %220 = vmatprep.subr.mxu0 0.0
    %221 = vmatpush1.msra.mxu0 0.0
    %222 = vmatprep.subr.mxu0 0.0
    %223 = vmatpush1.msra.mxu0 0.0
    %224 = vmatprep.subr.mxu0 0.0
    %225 = vmatpush1.msra.mxu0 0.0
    %226 = vmatprep.subr.mxu0 0.0
    %227 = vmatpush1.msra.mxu0 0.0
    %228 = vmatprep.subr.mxu0 0.0
    %229 = vmatpush1.msra.mxu0 0.0
    %230 = vmatprep.subr.mxu0 0.0
    %231 = vmatpush1.msra.mxu0 0.0
    %232 = vmatprep.subr.mxu0 0.0
    %233 = vmatpush1.msra.mxu0 0.0
    %234 = vmatprep.subr.mxu0 0.0
    %235 = vmatpush1.msra.mxu0 0.0
    %236 = vmatprep.subr.mxu0 %v207
    %237 = vmatpush1.msra.mxu0 %v206
    %238 = vmatprep.subr.mxu0 %v205
    %239 = vmatpush1.msra.mxu0 %v204
    %240 = vmatprep.subr.mxu0 0.0
    %241 = vmatpush2.msra.mxu0 0.0
    %242 = vmatprep.subr.mxu0 0.0
    %243 = vmatpush2.msra.mxu0 0.0
    %244 = vmatprep.subr.mxu0 0.0
    %245 = vmatpush2.msra.mxu0 0.0
    %246 = vmatprep.subr.mxu0 0.0
    %247 = vmatpush2.msra.mxu0 0.0
    %248 = vmatprep.subr.mxu0 0.0
    %249 = vmatpush2.msra.mxu0 0.0
    %250 = vmatprep.subr.mxu0 0.0
    %251 = vmatpush2.msra.mxu0 0.0
    %252 = vmatprep.subr.mxu0 0.0
    %253 = vmatpush2.msra.mxu0 0.0
    %254 = vmatprep.subr.mxu0 0.0
    %255 = vmatpush2.msra.mxu0 0.0
    %256 = vmatprep.subr.mxu0 0.0
    %257 = vmatpush2.msra.mxu0 0.0
    %258 = vmatprep.subr.mxu0 0.0
    %259 = vmatpush2.msra.mxu0 0.0
    %260 = vmatprep.subr.mxu0 0.0
    %261 = vmatpush2.msra.mxu0 0.0
    %262 = vmatprep.subr.mxu0 0.0
    %263 = vmatpush2.msra.mxu0 0.0
    %264 = vmatprep.subr.mxu0 0.0
    %265 = vmatpush2.msra.mxu0 0.0
    %266 = vmatprep.subr.mxu0 0.0
    %267 = vmatpush2.msra.mxu0 0.0
    %268 = vmatprep.subr.mxu0 0.0
    %269 = vmatpush2.msra.mxu0 0.0
    %270 = vmatprep.subr.mxu0 0.0
    %271 = vmatpush2.msra.mxu0 0.0
    %272 = vmatprep.mubr.f32.mxu0 0.0
    %273 = vmatmul.mubr.f32.gmra.mxu0 %v68
    %v274 = vpop.f32.mrf.mxu0
    %v275 = vadd.f32 0.0, %v274
    %v276 = vpop.f32.mrf.mxu0
    %v277 = vadd.f32 0.0, %v276
    %278 = vmatprep.mubr.f32.mxu0 0.0
    %279 = vmatmul.mubr.f32.gmra.mxu0 %v71
    %v280 = vpop.f32.mrf.mxu0
    %v281 = vadd.f32 0.0, %v280
    %v282 = vpop.f32.mrf.mxu0
    %v283 = vadd.f32 0.0, %v282
    %284 = vmatprep.mubr.f32.mxu0 0.0
    %285 = vmatmul.mubr.f32.gmra.mxu0 %v74
    %v286 = vpop.f32.mrf.mxu0
    %v287 = vadd.f32 0.0, %v286
    %v288 = vpop.f32.mrf.mxu0
    %v289 = vadd.f32 0.0, %v288
    %290 = vmatprep.mubr.f32.mxu0 0.0
    %291 = vmatmul.mubr.f32.gmra.mxu0 %v77
    %v292 = vpop.f32.mrf.mxu0
    %v293 = vadd.f32 0.0, %v292
    %v294 = vpop.f32.mrf.mxu0
    %v295 = vadd.f32 0.0, %v294
    %296 = vmatprep.mubr.f32.mxu0 0.0
    %297 = vmatmul.mubr.f32.gmra.mxu0 %v80
    %v298 = vpop.f32.mrf.mxu0
    %v299 = vadd.f32 0.0, %v298
    %v300 = vpop.f32.mrf.mxu0
    %v301 = vadd.f32 0.0, %v300
    %302 = vmatprep.mubr.f32.mxu0 0.0
    %303 = vmatmul.mubr.f32.gmra.mxu0 %v83
    %v304 = vpop.f32.mrf.mxu0
    %v305 = vadd.f32 0.0, %v304
    %v306 = vpop.f32.mrf.mxu0
    %v307 = vadd.f32 0.0, %v306
    %308 = vmatprep.mubr.f32.mxu0 0.0
    %309 = vmatmul.mubr.f32.gmra.mxu0 %v86
    %v310 = vpop.f32.mrf.mxu0
    %v311 = vadd.f32 0.0, %v310
    %v312 = vpop.f32.mrf.mxu0
    %v313 = vadd.f32 0.0, %v312
    %314 = vmatprep.mubr.f32.mxu0 0.0
    %315 = vmatmul.mubr.f32.gmra.mxu0 %v89
    %v316 = vpop.f32.mrf.mxu0
    %v317 = vadd.f32 0.0, %v316
    %v318 = vpop.f32.mrf.mxu0
    %v319 = vadd.f32 0.0, %v318
    %320 = vdwg.mxu0
    %v321 = vld [vmem:[#allocation2] sm:$0xff]
    %v322 = vld [vmem:[#allocation2 + $0x8] sm:$0xff]
    %v323 = vld [vmem:[#allocation2 + $0x10] sm:$0xff]
    %v324 = vld [vmem:[#allocation2 + $0x18] sm:$0xff]
    %v325 = vld [vmem:[#allocation2 + $0x20] sm:$0xff]
    %v326 = vld [vmem:[#allocation2 + $0x28] sm:$0xff]
    %v327 = vld [vmem:[#allocation2 + $0x30] sm:$0xff]
    %v328 = vld [vmem:[#allocation2 + $0x38] sm:$0xff]
    %v329 = vld [vmem:[#allocation2 + $0x40] sm:$0xff]
    %v330 = vld [vmem:[#allocation2 + $0x48] sm:$0xff]
    %v331 = vld [vmem:[#allocation2 + $0x50] sm:$0xff]
    %v332 = vld [vmem:[#allocation2 + $0x58] sm:$0xff]
    %v333 = vld [vmem:[#allocation2 + $0x60] sm:$0xff]
    %v334 = vld [vmem:[#allocation2 + $0x68] sm:$0xff]
    %v335 = vld [vmem:[#allocation2 + $0x70] sm:$0xff]
    %v336 = vld [vmem:[#allocation2 + $0x78] sm:$0xff]
    %v337 = vld [vmem:[%s6] sm:$0x1]
    %v339 = vlaneseq
    %v340 = vshrl.u32 %v339, 7
    %v341 = vsub.s32 0, %v340
    %v342 = vrot.slane %v337, %v341
    %v344 = vld [vmem:[%s1] sm:$0xff]
    %v345 = vadd.f32 %v158, %v317
    %v346 = vadd.f32 %v160, %v319
    %vm347 = vcmask 523264
    %v349 = vsel %vm347, %v344, 0
    %351 = vmatprep.subr.mxu0 0.0
    %352 = vmatpush1.msra.mxu0 0.0
    %353 = vmatprep.subr.mxu0 0.0
    %354 = vmatpush1.msra.mxu0 0.0
    %355 = vmatprep.subr.mxu0 0.0
    %356 = vmatpush1.msra.mxu0 0.0
    %357 = vmatprep.subr.mxu0 0.0
    %358 = vmatpush1.msra.mxu0 0.0
    %359 = vmatprep.subr.mxu0 0.0
    %360 = vmatpush1.msra.mxu0 0.0
    %361 = vmatprep.subr.mxu0 0.0
    %362 = vmatpush1.msra.mxu0 0.0
    %363 = vmatprep.subr.mxu0 0.0
    %364 = vmatpush1.msra.mxu0 0.0
    %365 = vmatprep.subr.mxu0 0.0
    %366 = vmatpush1.msra.mxu0 0.0
    %367 = vmatprep.subr.mxu0 %v336
    %368 = vmatpush1.msra.mxu0 %v335
    %369 = vmatprep.subr.mxu0 %v334
    %370 = vmatpush1.msra.mxu0 %v333
    %371 = vmatprep.subr.mxu0 %v332
    %372 = vmatpush1.msra.mxu0 %v331
    %373 = vmatprep.subr.mxu0 %v330
    %374 = vmatpush1.msra.mxu0 %v329
    %375 = vmatprep.subr.mxu0 %v328
    %376 = vmatpush1.msra.mxu0 %v327
    %377 = vmatprep.subr.mxu0 %v326
    %378 = vmatpush1.msra.mxu0 %v325
    %379 = vmatprep.subr.mxu0 %v324
    %380 = vmatpush1.msra.mxu0 %v323
    %381 = vmatprep.subr.mxu0 %v322
    %382 = vmatpush1.msra.mxu0 %v321
    %383 = vmatprep.subr.mxu0 0.0
    %384 = vmatpush2.msra.mxu0 0.0
    %385 = vmatprep.subr.mxu0 0.0
    %386 = vmatpush2.msra.mxu0 0.0
    %387 = vmatprep.subr.mxu0 0.0
    %388 = vmatpush2.msra.mxu0 0.0
    %389 = vmatprep.subr.mxu0 0.0
    %390 = vmatpush2.msra.mxu0 0.0
    %391 = vmatprep.subr.mxu0 0.0
    %392 = vmatpush2.msra.mxu0 0.0
    %393 = vmatprep.subr.mxu0 0.0
    %394 = vmatpush2.msra.mxu0 0.0
    %395 = vmatprep.subr.mxu0 0.0
    %396 = vmatpush2.msra.mxu0 0.0
    %397 = vmatprep.subr.mxu0 0.0
    %398 = vmatpush2.msra.mxu0 0.0
    %399 = vmatprep.subr.mxu0 0.0
    %400 = vmatpush2.msra.mxu0 0.0
    %401 = vmatprep.subr.mxu0 0.0
    %402 = vmatpush2.msra.mxu0 0.0
    %403 = vmatprep.subr.mxu0 0.0
    %404 = vmatpush2.msra.mxu0 0.0
    %405 = vmatprep.subr.mxu0 0.0
    %406 = vmatpush2.msra.mxu0 0.0
    %407 = vmatprep.subr.mxu0 0.0
    %408 = vmatpush2.msra.mxu0 0.0
    %409 = vmatprep.subr.mxu0 0.0
    %410 = vmatpush2.msra.mxu0 0.0
    %411 = vmatprep.subr.mxu0 0.0
    %412 = vmatpush2.msra.mxu0 0.0
    %413 = vmatprep.subr.mxu0 0.0
    %414 = vmatpush2.msra.mxu0 0.0
    %415 = vmatprep.mubr.f32.mxu0 0.0
    %416 = vmatmul.mubr.f32.gmra.mxu0 %v349
    %v417 = vpop.f32.mrf.mxu0
    %v418 = vadd.f32 0.0, %v417
    %v419 = vpop.f32.mrf.mxu0
    %v420 = vadd.f32 0.0, %v419
    %421 = vdwg.mxu0
    %v422 = vadd.f32 %v345, %v418
    %v423 = vxor.u32 %v422, 2147483648
    %v424 = vmul.f32 %v423, 1.442695
    %v425 = vpow.pop %v424
    %v426 = vadd.f32 %v425, 1.0
    %v427 = vrcp.pop %v426
    %v428 = vmul.f32 1.0, %v427
    %v429 = vadd.f32 %v420, %v342
    %v430 = vmul.f32 %v428, %v429
    %v431 = vadd.f32 %v346, %v430
    %v432 = vtanh.pop %v431
    %v433 = vsub.f32 1.0, %v428
    %435 = vrot.lane.b32.xlu0 %v432, 64
    %v436 = vpop.permute.xlu0 %435
    %v438 = vmul.f32 %v433, %v436
    %439 = vrot.lane.b32.xlu0 %v344, 64
    %v440 = vpop.permute.xlu0 %439
    %v442 = vmul.f32 %v428, %v440
    %v443 = vadd.f32 %v438, %v442
    %v444 = vadd.f32 %v164, %v311
    %v445 = vadd.f32 %v166, %v313
    %447 = vrot.lane.b32.xlu0 %v443, 64
    %v448 = vpop.permute.xlu0 %447
    %v449 = vsel %vm347, %v448, 0
    %451 = vmatprep.subr.mxu0 0.0
    %452 = vmatpush1.msra.mxu0 0.0
    %453 = vmatprep.subr.mxu0 0.0
    %454 = vmatpush1.msra.mxu0 0.0
    %455 = vmatprep.subr.mxu0 0.0
    %456 = vmatpush1.msra.mxu0 0.0
    %457 = vmatprep.subr.mxu0 0.0
    %458 = vmatpush1.msra.mxu0 0.0
    %459 = vmatprep.subr.mxu0 0.0
    %460 = vmatpush1.msra.mxu0 0.0
    %461 = vmatprep.subr.mxu0 0.0
    %462 = vmatpush1.msra.mxu0 0.0
    %463 = vmatprep.subr.mxu0 0.0
    %464 = vmatpush1.msra.mxu0 0.0
    %465 = vmatprep.subr.mxu0 0.0
    %466 = vmatpush1.msra.mxu0 0.0
    %467 = vmatprep.subr.mxu0 %v336
    %468 = vmatpush1.msra.mxu0 %v335
    %469 = vmatprep.subr.mxu0 %v334
    %470 = vmatpush1.msra.mxu0 %v333
    %471 = vmatprep.subr.mxu0 %v332
    %472 = vmatpush1.msra.mxu0 %v331
    %473 = vmatprep.subr.mxu0 %v330
    %474 = vmatpush1.msra.mxu0 %v329
    %475 = vmatprep.subr.mxu0 %v328
    %476 = vmatpush1.msra.mxu0 %v327
    %477 = vmatprep.subr.mxu0 %v326
    %478 = vmatpush1.msra.mxu0 %v325
    %479 = vmatprep.subr.mxu0 %v324
    %480 = vmatpush1.msra.mxu0 %v323
    %481 = vmatprep.subr.mxu0 %v322
    %482 = vmatpush1.msra.mxu0 %v321
    %483 = vmatprep.subr.mxu0 0.0
    %484 = vmatpush2.msra.mxu0 0.0
    %485 = vmatprep.subr.mxu0 0.0
    %486 = vmatpush2.msra.mxu0 0.0
    %487 = vmatprep.subr.mxu0 0.0
    %488 = vmatpush2.msra.mxu0 0.0
    %489 = vmatprep.subr.mxu0 0.0
    %490 = vmatpush2.msra.mxu0 0.0
    %491 = vmatprep.subr.mxu0 0.0
    %492 = vmatpush2.msra.mxu0 0.0
    %493 = vmatprep.subr.mxu0 0.0
    %494 = vmatpush2.msra.mxu0 0.0
    %495 = vmatprep.subr.mxu0 0.0
    %496 = vmatpush2.msra.mxu0 0.0
    %497 = vmatprep.subr.mxu0 0.0
    %498 = vmatpush2.msra.mxu0 0.0
    %499 = vmatprep.subr.mxu0 0.0
    %500 = vmatpush2.msra.mxu0 0.0
    %501 = vmatprep.subr.mxu0 0.0
    %502 = vmatpush2.msra.mxu0 0.0
    %503 = vmatprep.subr.mxu0 0.0
    %504 = vmatpush2.msra.mxu0 0.0
    %505 = vmatprep.subr.mxu0 0.0
    %506 = vmatpush2.msra.mxu0 0.0
    %507 = vmatprep.subr.mxu0 0.0
    %508 = vmatpush2.msra.mxu0 0.0
    %509 = vmatprep.subr.mxu0 0.0
    %510 = vmatpush2.msra.mxu0 0.0
    %511 = vmatprep.subr.mxu0 0.0
    %512 = vmatpush2.msra.mxu0 0.0
    %513 = vmatprep.subr.mxu0 0.0
    %514 = vmatpush2.msra.mxu0 0.0
    %515 = vmatprep.mubr.f32.mxu0 0.0
    %516 = vmatmul.mubr.f32.gmra.mxu0 %v449
    %v517 = vpop.f32.mrf.mxu0
    %v518 = vadd.f32 0.0, %v517
    %v519 = vpop.f32.mrf.mxu0
    %v520 = vadd.f32 0.0, %v519
    %521 = vdwg.mxu0
    %v522 = vadd.f32 %v444, %v518
    %v523 = vxor.u32 %v522, 2147483648
    %v524 = vmul.f32 %v523, 1.442695
    %v525 = vpow.pop %v524
    %v526 = vadd.f32 %v525, 1.0
    %v527 = vrcp.pop %v526
    %v528 = vmul.f32 1.0, %v527
    %v529 = vadd.f32 %v520, %v342
    %v530 = vmul.f32 %v528, %v529
    %v531 = vadd.f32 %v445, %v530
    %v532 = vtanh.pop %v531
    %v533 = vsub.f32 1.0, %v528
    %535 = vrot.lane.b32.xlu0 %v532, 64
    %v536 = vpop.permute.xlu0 %535
    %v538 = vmul.f32 %v533, %v536
    %v539 = vmul.f32 %v528, %v443
    %v540 = vadd.f32 %v538, %v539
    %v541 = vadd.f32 %v170, %v305
    %v542 = vadd.f32 %v172, %v307
    %544 = vrot.lane.b32.xlu0 %v540, 64
    %v545 = vpop.permute.xlu0 %544
    %v546 = vsel %vm347, %v545, 0
    %548 = vmatprep.subr.mxu0 0.0
    %549 = vmatpush1.msra.mxu0 0.0
    %550 = vmatprep.subr.mxu0 0.0
    %551 = vmatpush1.msra.mxu0 0.0
    %552 = vmatprep.subr.mxu0 0.0
    %553 = vmatpush1.msra.mxu0 0.0
    %554 = vmatprep.subr.mxu0 0.0
    %555 = vmatpush1.msra.mxu0 0.0
    %556 = vmatprep.subr.mxu0 0.0
    %557 = vmatpush1.msra.mxu0 0.0
    %558 = vmatprep.subr.mxu0 0.0
    %559 = vmatpush1.msra.mxu0 0.0
    %560 = vmatprep.subr.mxu0 0.0
    %561 = vmatpush1.msra.mxu0 0.0
    %562 = vmatprep.subr.mxu0 0.0
    %563 = vmatpush1.msra.mxu0 0.0
    %564 = vmatprep.subr.mxu0 %v336
    %565 = vmatpush1.msra.mxu0 %v335
    %566 = vmatprep.subr.mxu0 %v334
    %567 = vmatpush1.msra.mxu0 %v333
    %568 = vmatprep.subr.mxu0 %v332
    %569 = vmatpush1.msra.mxu0 %v331
    %570 = vmatprep.subr.mxu0 %v330
    %571 = vmatpush1.msra.mxu0 %v329
    %572 = vmatprep.subr.mxu0 %v328
    %573 = vmatpush1.msra.mxu0 %v327
    %574 = vmatprep.subr.mxu0 %v326
    %575 = vmatpush1.msra.mxu0 %v325
    %576 = vmatprep.subr.mxu0 %v324
    %577 = vmatpush1.msra.mxu0 %v323
    %578 = vmatprep.subr.mxu0 %v322
    %579 = vmatpush1.msra.mxu0 %v321
    %580 = vmatprep.subr.mxu0 0.0
    %581 = vmatpush2.msra.mxu0 0.0
    %582 = vmatprep.subr.mxu0 0.0
    %583 = vmatpush2.msra.mxu0 0.0
    %584 = vmatprep.subr.mxu0 0.0
    %585 = vmatpush2.msra.mxu0 0.0
    %586 = vmatprep.subr.mxu0 0.0
    %587 = vmatpush2.msra.mxu0 0.0
    %588 = vmatprep.subr.mxu0 0.0
    %589 = vmatpush2.msra.mxu0 0.0
    %590 = vmatprep.subr.mxu0 0.0
    %591 = vmatpush2.msra.mxu0 0.0
    %592 = vmatprep.subr.mxu0 0.0
    %593 = vmatpush2.msra.mxu0 0.0
    %594 = vmatprep.subr.mxu0 0.0
    %595 = vmatpush2.msra.mxu0 0.0
    %596 = vmatprep.subr.mxu0 0.0
    %597 = vmatpush2.msra.mxu0 0.0
    %598 = vmatprep.subr.mxu0 0.0
    %599 = vmatpush2.msra.mxu0 0.0
    %600 = vmatprep.subr.mxu0 0.0
    %601 = vmatpush2.msra.mxu0 0.0
    %602 = vmatprep.subr.mxu0 0.0
    %603 = vmatpush2.msra.mxu0 0.0
    %604 = vmatprep.subr.mxu0 0.0
    %605 = vmatpush2.msra.mxu0 0.0
    %606 = vmatprep.subr.mxu0 0.0
    %607 = vmatpush2.msra.mxu0 0.0
    %608 = vmatprep.subr.mxu0 0.0
    %609 = vmatpush2.msra.mxu0 0.0
    %610 = vmatprep.subr.mxu0 0.0
    %611 = vmatpush2.msra.mxu0 0.0
    %612 = vmatprep.mubr.f32.mxu0 0.0
    %613 = vmatmul.mubr.f32.gmra.mxu0 %v546
    %v614 = vpop.f32.mrf.mxu0
    %v615 = vadd.f32 0.0, %v614
    %v616 = vpop.f32.mrf.mxu0
    %v617 = vadd.f32 0.0, %v616
    %618 = vdwg.mxu0
    %v619 = vadd.f32 %v541, %v615
    %v620 = vxor.u32 %v619, 2147483648
    %v621 = vmul.f32 %v620, 1.442695
    %v622 = vpow.pop %v621
    %v623 = vadd.f32 %v622, 1.0
    %v624 = vrcp.pop %v623
    %v625 = vmul.f32 1.0, %v624
    %v626 = vadd.f32 %v617, %v342
    %v627 = vmul.f32 %v625, %v626
    %v628 = vadd.f32 %v542, %v627
    %v629 = vtanh.pop %v628
    %v630 = vsub.f32 1.0, %v625
    %632 = vrot.lane.b32.xlu0 %v629, 64
    %v633 = vpop.permute.xlu0 %632
    %v635 = vmul.f32 %v630, %v633
    %v636 = vmul.f32 %v625, %v540
    %v637 = vadd.f32 %v635, %v636
    %v638 = vadd.f32 %v176, %v299
    %v639 = vadd.f32 %v178, %v301
    %641 = vrot.lane.b32.xlu0 %v637, 64
    %v642 = vpop.permute.xlu0 %641
    %v643 = vsel %vm347, %v642, 0
    %645 = vmatprep.subr.mxu0 0.0
    %646 = vmatpush1.msra.mxu0 0.0
    %647 = vmatprep.subr.mxu0 0.0
    %648 = vmatpush1.msra.mxu0 0.0
    %649 = vmatprep.subr.mxu0 0.0
    %650 = vmatpush1.msra.mxu0 0.0
    %651 = vmatprep.subr.mxu0 0.0
    %652 = vmatpush1.msra.mxu0 0.0
    %653 = vmatprep.subr.mxu0 0.0
    %654 = vmatpush1.msra.mxu0 0.0
    %655 = vmatprep.subr.mxu0 0.0
    %656 = vmatpush1.msra.mxu0 0.0
    %657 = vmatprep.subr.mxu0 0.0
    %658 = vmatpush1.msra.mxu0 0.0
    %659 = vmatprep.subr.mxu0 0.0
    %660 = vmatpush1.msra.mxu0 0.0
    %661 = vmatprep.subr.mxu0 %v336
    %662 = vmatpush1.msra.mxu0 %v335
    %663 = vmatprep.subr.mxu0 %v334
    %664 = vmatpush1.msra.mxu0 %v333
    %665 = vmatprep.subr.mxu0 %v332
    %666 = vmatpush1.msra.mxu0 %v331
    %667 = vmatprep.subr.mxu0 %v330
    %668 = vmatpush1.msra.mxu0 %v329
    %669 = vmatprep.subr.mxu0 %v328
    %670 = vmatpush1.msra.mxu0 %v327
    %671 = vmatprep.subr.mxu0 %v326
    %672 = vmatpush1.msra.mxu0 %v325
    %673 = vmatprep.subr.mxu0 %v324
    %674 = vmatpush1.msra.mxu0 %v323
    %675 = vmatprep.subr.mxu0 %v322
    %676 = vmatpush1.msra.mxu0 %v321
    %677 = vmatprep.subr.mxu0 0.0
    %678 = vmatpush2.msra.mxu0 0.0
    %679 = vmatprep.subr.mxu0 0.0
    %680 = vmatpush2.msra.mxu0 0.0
    %681 = vmatprep.subr.mxu0 0.0
    %682 = vmatpush2.msra.mxu0 0.0
    %683 = vmatprep.subr.mxu0 0.0
    %684 = vmatpush2.msra.mxu0 0.0
    %685 = vmatprep.subr.mxu0 0.0
    %686 = vmatpush2.msra.mxu0 0.0
    %687 = vmatprep.subr.mxu0 0.0
    %688 = vmatpush2.msra.mxu0 0.0
    %689 = vmatprep.subr.mxu0 0.0
    %690 = vmatpush2.msra.mxu0 0.0
    %691 = vmatprep.subr.mxu0 0.0
    %692 = vmatpush2.msra.mxu0 0.0
    %693 = vmatprep.subr.mxu0 0.0
    %694 = vmatpush2.msra.mxu0 0.0
    %695 = vmatprep.subr.mxu0 0.0
    %696 = vmatpush2.msra.mxu0 0.0
    %697 = vmatprep.subr.mxu0 0.0
    %698 = vmatpush2.msra.mxu0 0.0
    %699 = vmatprep.subr.mxu0 0.0
    %700 = vmatpush2.msra.mxu0 0.0
    %701 = vmatprep.subr.mxu0 0.0
    %702 = vmatpush2.msra.mxu0 0.0
    %703 = vmatprep.subr.mxu0 0.0
    %704 = vmatpush2.msra.mxu0 0.0
    %705 = vmatprep.subr.mxu0 0.0
    %706 = vmatpush2.msra.mxu0 0.0
    %707 = vmatprep.subr.mxu0 0.0
    %708 = vmatpush2.msra.mxu0 0.0
    %709 = vmatprep.mubr.f32.mxu0 0.0
    %710 = vmatmul.mubr.f32.gmra.mxu0 %v643
    %v711 = vpop.f32.mrf.mxu0
    %v712 = vadd.f32 0.0, %v711
    %v713 = vpop.f32.mrf.mxu0
    %v714 = vadd.f32 0.0, %v713
    %715 = vdwg.mxu0
    %v716 = vadd.f32 %v638, %v712
    %v717 = vxor.u32 %v716, 2147483648
    %v718 = vmul.f32 %v717, 1.442695
    %v719 = vpow.pop %v718
    %v720 = vadd.f32 %v719, 1.0
    %v721 = vrcp.pop %v720
    %v722 = vmul.f32 1.0, %v721
    %v723 = vadd.f32 %v714, %v342
    %v724 = vmul.f32 %v722, %v723
    %v725 = vadd.f32 %v639, %v724
    %v726 = vtanh.pop %v725
    %v727 = vsub.f32 1.0, %v722
    %729 = vrot.lane.b32.xlu0 %v726, 64
    %v730 = vpop.permute.xlu0 %729
    %v732 = vmul.f32 %v727, %v730
    %v733 = vmul.f32 %v722, %v637
    %v734 = vadd.f32 %v732, %v733
    %v735 = vadd.f32 %v182, %v293
    %v736 = vadd.f32 %v184, %v295
    %738 = vrot.lane.b32.xlu0 %v734, 64
    %v739 = vpop.permute.xlu0 %738
    %v740 = vsel %vm347, %v739, 0
    %742 = vmatprep.subr.mxu0 0.0
    %743 = vmatpush1.msra.mxu0 0.0
    %744 = vmatprep.subr.mxu0 0.0
    %745 = vmatpush1.msra.mxu0 0.0
    %746 = vmatprep.subr.mxu0 0.0
    %747 = vmatpush1.msra.mxu0 0.0
    %748 = vmatprep.subr.mxu0 0.0
    %749 = vmatpush1.msra.mxu0 0.0
    %750 = vmatprep.subr.mxu0 0.0
    %751 = vmatpush1.msra.mxu0 0.0
    %752 = vmatprep.subr.mxu0 0.0
    %753 = vmatpush1.msra.mxu0 0.0
    %754 = vmatprep.subr.mxu0 0.0
    %755 = vmatpush1.msra.mxu0 0.0
    %756 = vmatprep.subr.mxu0 0.0
    %757 = vmatpush1.msra.mxu0 0.0
    %758 = vmatprep.subr.mxu0 %v336
    %759 = vmatpush1.msra.mxu0 %v335
    %760 = vmatprep.subr.mxu0 %v334
    %761 = vmatpush1.msra.mxu0 %v333
    %762 = vmatprep.subr.mxu0 %v332
    %763 = vmatpush1.msra.mxu0 %v331
    %764 = vmatprep.subr.mxu0 %v330
    %765 = vmatpush1.msra.mxu0 %v329
    %766 = vmatprep.subr.mxu0 %v328
    %767 = vmatpush1.msra.mxu0 %v327
    %768 = vmatprep.subr.mxu0 %v326
    %769 = vmatpush1.msra.mxu0 %v325
    %770 = vmatprep.subr.mxu0 %v324
    %771 = vmatpush1.msra.mxu0 %v323
    %772 = vmatprep.subr.mxu0 %v322
    %773 = vmatpush1.msra.mxu0 %v321
    %774 = vmatprep.subr.mxu0 0.0
    %775 = vmatpush2.msra.mxu0 0.0
    %776 = vmatprep.subr.mxu0 0.0
    %777 = vmatpush2.msra.mxu0 0.0
    %778 = vmatprep.subr.mxu0 0.0
    %779 = vmatpush2.msra.mxu0 0.0
    %780 = vmatprep.subr.mxu0 0.0
    %781 = vmatpush2.msra.mxu0 0.0
    %782 = vmatprep.subr.mxu0 0.0
    %783 = vmatpush2.msra.mxu0 0.0
    %784 = vmatprep.subr.mxu0 0.0
    %785 = vmatpush2.msra.mxu0 0.0
    %786 = vmatprep.subr.mxu0 0.0
    %787 = vmatpush2.msra.mxu0 0.0
    %788 = vmatprep.subr.mxu0 0.0
    %789 = vmatpush2.msra.mxu0 0.0
    %790 = vmatprep.subr.mxu0 0.0
    %791 = vmatpush2.msra.mxu0 0.0
    %792 = vmatprep.subr.mxu0 0.0
    %793 = vmatpush2.msra.mxu0 0.0
    %794 = vmatprep.subr.mxu0 0.0
    %795 = vmatpush2.msra.mxu0 0.0
    %796 = vmatprep.subr.mxu0 0.0
    %797 = vmatpush2.msra.mxu0 0.0
    %798 = vmatprep.subr.mxu0 0.0
    %799 = vmatpush2.msra.mxu0 0.0
    %800 = vmatprep.subr.mxu0 0.0
    %801 = vmatpush2.msra.mxu0 0.0
    %802 = vmatprep.subr.mxu0 0.0
    %803 = vmatpush2.msra.mxu0 0.0
    %804 = vmatprep.subr.mxu0 0.0
    %805 = vmatpush2.msra.mxu0 0.0
    %806 = vmatprep.mubr.f32.mxu0 0.0
    %807 = vmatmul.mubr.f32.gmra.mxu0 %v740
    %v808 = vpop.f32.mrf.mxu0
    %v809 = vadd.f32 0.0, %v808
    %v810 = vpop.f32.mrf.mxu0
    %v811 = vadd.f32 0.0, %v810
    %812 = vdwg.mxu0
    %v813 = vadd.f32 %v735, %v809
    %v814 = vxor.u32 %v813, 2147483648
    %v815 = vmul.f32 %v814, 1.442695
    %v816 = vpow.pop %v815
    %v817 = vadd.f32 %v816, 1.0
    %v818 = vrcp.pop %v817
    %v819 = vmul.f32 1.0, %v818
    %v820 = vadd.f32 %v811, %v342
    %v821 = vmul.f32 %v819, %v820
    %v822 = vadd.f32 %v736, %v821
    %v823 = vtanh.pop %v822
    %v824 = vsub.f32 1.0, %v819
    %826 = vrot.lane.b32.xlu0 %v823, 64
    %v827 = vpop.permute.xlu0 %826
    %v829 = vmul.f32 %v824, %v827
    %v830 = vmul.f32 %v819, %v734
    %v831 = vadd.f32 %v829, %v830
    %v832 = vadd.f32 %v188, %v287
    %v833 = vadd.f32 %v190, %v289
    %835 = vrot.lane.b32.xlu0 %v831, 64
    %v836 = vpop.permute.xlu0 %835
    %v837 = vsel %vm347, %v836, 0
    %839 = vmatprep.subr.mxu0 0.0
    %840 = vmatpush1.msra.mxu0 0.0
    %841 = vmatprep.subr.mxu0 0.0
    %842 = vmatpush1.msra.mxu0 0.0
    %843 = vmatprep.subr.mxu0 0.0
    %844 = vmatpush1.msra.mxu0 0.0
    %845 = vmatprep.subr.mxu0 0.0
    %846 = vmatpush1.msra.mxu0 0.0
    %847 = vmatprep.subr.mxu0 0.0
    %848 = vmatpush1.msra.mxu0 0.0
    %849 = vmatprep.subr.mxu0 0.0
    %850 = vmatpush1.msra.mxu0 0.0
    %851 = vmatprep.subr.mxu0 0.0
    %852 = vmatpush1.msra.mxu0 0.0
    %853 = vmatprep.subr.mxu0 0.0
    %854 = vmatpush1.msra.mxu0 0.0
    %855 = vmatprep.subr.mxu0 %v336
    %856 = vmatpush1.msra.mxu0 %v335
    %857 = vmatprep.subr.mxu0 %v334
    %858 = vmatpush1.msra.mxu0 %v333
    %859 = vmatprep.subr.mxu0 %v332
    %860 = vmatpush1.msra.mxu0 %v331
    %861 = vmatprep.subr.mxu0 %v330
    %862 = vmatpush1.msra.mxu0 %v329
    %863 = vmatprep.subr.mxu0 %v328
    %864 = vmatpush1.msra.mxu0 %v327
    %865 = vmatprep.subr.mxu0 %v326
    %866 = vmatpush1.msra.mxu0 %v325
    %867 = vmatprep.subr.mxu0 %v324
    %868 = vmatpush1.msra.mxu0 %v323
    %869 = vmatprep.subr.mxu0 %v322
    %870 = vmatpush1.msra.mxu0 %v321
    %871 = vmatprep.subr.mxu0 0.0
    %872 = vmatpush2.msra.mxu0 0.0
    %873 = vmatprep.subr.mxu0 0.0
    %874 = vmatpush2.msra.mxu0 0.0
    %875 = vmatprep.subr.mxu0 0.0
    %876 = vmatpush2.msra.mxu0 0.0
    %877 = vmatprep.subr.mxu0 0.0
    %878 = vmatpush2.msra.mxu0 0.0
    %879 = vmatprep.subr.mxu0 0.0
    %880 = vmatpush2.msra.mxu0 0.0
    %881 = vmatprep.subr.mxu0 0.0
    %882 = vmatpush2.msra.mxu0 0.0
    %883 = vmatprep.subr.mxu0 0.0
    %884 = vmatpush2.msra.mxu0 0.0
    %885 = vmatprep.subr.mxu0 0.0
    %886 = vmatpush2.msra.mxu0 0.0
    %887 = vmatprep.subr.mxu0 0.0
    %888 = vmatpush2.msra.mxu0 0.0
    %889 = vmatprep.subr.mxu0 0.0
    %890 = vmatpush2.msra.mxu0 0.0
    %891 = vmatprep.subr.mxu0 0.0
    %892 = vmatpush2.msra.mxu0 0.0
    %893 = vmatprep.subr.mxu0 0.0
    %894 = vmatpush2.msra.mxu0 0.0
    %895 = vmatprep.subr.mxu0 0.0
    %896 = vmatpush2.msra.mxu0 0.0
    %897 = vmatprep.subr.mxu0 0.0
    %898 = vmatpush2.msra.mxu0 0.0
    %899 = vmatprep.subr.mxu0 0.0
    %900 = vmatpush2.msra.mxu0 0.0
    %901 = vmatprep.subr.mxu0 0.0
    %902 = vmatpush2.msra.mxu0 0.0
    %903 = vmatprep.mubr.f32.mxu0 0.0
    %904 = vmatmul.mubr.f32.gmra.mxu0 %v837
    %v905 = vpop.f32.mrf.mxu0
    %v906 = vadd.f32 0.0, %v905
    %v907 = vpop.f32.mrf.mxu0
    %v908 = vadd.f32 0.0, %v907
    %909 = vdwg.mxu0
    %v910 = vadd.f32 %v832, %v906
    %v911 = vxor.u32 %v910, 2147483648
    %v912 = vmul.f32 %v911, 1.442695
    %v913 = vpow.pop %v912
    %v914 = vadd.f32 %v913, 1.0
    %v915 = vrcp.pop %v914
    %v916 = vmul.f32 1.0, %v915
    %v917 = vadd.f32 %v908, %v342
    %v918 = vmul.f32 %v916, %v917
    %v919 = vadd.f32 %v833, %v918
    %v920 = vtanh.pop %v919
    %v921 = vsub.f32 1.0, %v916
    %923 = vrot.lane.b32.xlu0 %v920, 64
    %v924 = vpop.permute.xlu0 %923
    %v926 = vmul.f32 %v921, %v924
    %v927 = vmul.f32 %v916, %v831
    %v928 = vadd.f32 %v926, %v927
    %v929 = vadd.f32 %v194, %v281
    %v930 = vadd.f32 %v196, %v283
    %932 = vrot.lane.b32.xlu0 %v928, 64
    %v933 = vpop.permute.xlu0 %932
    %v934 = vsel %vm347, %v933, 0
    %936 = vmatprep.subr.mxu0 0.0
    %937 = vmatpush1.msra.mxu0 0.0
    %938 = vmatprep.subr.mxu0 0.0
    %939 = vmatpush1.msra.mxu0 0.0
    %940 = vmatprep.subr.mxu0 0.0
    %941 = vmatpush1.msra.mxu0 0.0
    %942 = vmatprep.subr.mxu0 0.0
    %943 = vmatpush1.msra.mxu0 0.0
    %944 = vmatprep.subr.mxu0 0.0
    %945 = vmatpush1.msra.mxu0 0.0
    %946 = vmatprep.subr.mxu0 0.0
    %947 = vmatpush1.msra.mxu0 0.0
    %948 = vmatprep.subr.mxu0 0.0
    %949 = vmatpush1.msra.mxu0 0.0
    %950 = vmatprep.subr.mxu0 0.0
    %951 = vmatpush1.msra.mxu0 0.0
    %952 = vmatprep.subr.mxu0 %v336
    %953 = vmatpush1.msra.mxu0 %v335
    %954 = vmatprep.subr.mxu0 %v334
    %955 = vmatpush1.msra.mxu0 %v333
    %956 = vmatprep.subr.mxu0 %v332
    %957 = vmatpush1.msra.mxu0 %v331
    %958 = vmatprep.subr.mxu0 %v330
    %959 = vmatpush1.msra.mxu0 %v329
    %960 = vmatprep.subr.mxu0 %v328
    %961 = vmatpush1.msra.mxu0 %v327
    %962 = vmatprep.subr.mxu0 %v326
    %963 = vmatpush1.msra.mxu0 %v325
    %964 = vmatprep.subr.mxu0 %v324
    %965 = vmatpush1.msra.mxu0 %v323
    %966 = vmatprep.subr.mxu0 %v322
    %967 = vmatpush1.msra.mxu0 %v321
    %968 = vmatprep.subr.mxu0 0.0
    %969 = vmatpush2.msra.mxu0 0.0
    %970 = vmatprep.subr.mxu0 0.0
    %971 = vmatpush2.msra.mxu0 0.0
    %972 = vmatprep.subr.mxu0 0.0
    %973 = vmatpush2.msra.mxu0 0.0
    %974 = vmatprep.subr.mxu0 0.0
    %975 = vmatpush2.msra.mxu0 0.0
    %976 = vmatprep.subr.mxu0 0.0
    %977 = vmatpush2.msra.mxu0 0.0
    %978 = vmatprep.subr.mxu0 0.0
    %979 = vmatpush2.msra.mxu0 0.0
    %980 = vmatprep.subr.mxu0 0.0
    %981 = vmatpush2.msra.mxu0 0.0
    %982 = vmatprep.subr.mxu0 0.0
    %983 = vmatpush2.msra.mxu0 0.0
    %984 = vmatprep.subr.mxu0 0.0
    %985 = vmatpush2.msra.mxu0 0.0
    %986 = vmatprep.subr.mxu0 0.0
    %987 = vmatpush2.msra.mxu0 0.0
    %988 = vmatprep.subr.mxu0 0.0
    %989 = vmatpush2.msra.mxu0 0.0
    %990 = vmatprep.subr.mxu0 0.0
    %991 = vmatpush2.msra.mxu0 0.0
    %992 = vmatprep.subr.mxu0 0.0
    %993 = vmatpush2.msra.mxu0 0.0
    %994 = vmatprep.subr.mxu0 0.0
    %995 = vmatpush2.msra.mxu0 0.0
    %996 = vmatprep.subr.mxu0 0.0
    %997 = vmatpush2.msra.mxu0 0.0
    %998 = vmatprep.subr.mxu0 0.0
    %999 = vmatpush2.msra.mxu0 0.0
    %1000 = vmatprep.mubr.f32.mxu0 0.0
    %1001 = vmatmul.mubr.f32.gmra.mxu0 %v934
    %v1002 = vpop.f32.mrf.mxu0
    %v1003 = vadd.f32 0.0, %v1002
    %v1004 = vpop.f32.mrf.mxu0
    %v1005 = vadd.f32 0.0, %v1004
    %1006 = vdwg.mxu0
    %v1007 = vadd.f32 %v929, %v1003
    %v1008 = vxor.u32 %v1007, 2147483648
    %v1009 = vmul.f32 %v1008, 1.442695
    %v1010 = vpow.pop %v1009
    %v1011 = vadd.f32 %v1010, 1.0
    %v1012 = vrcp.pop %v1011
    %v1013 = vmul.f32 1.0, %v1012
    %v1014 = vadd.f32 %v1005, %v342
    %v1015 = vmul.f32 %v1013, %v1014
    %v1016 = vadd.f32 %v930, %v1015
    %v1017 = vtanh.pop %v1016
    %v1018 = vsub.f32 1.0, %v1013
    %1020 = vrot.lane.b32.xlu0 %v1017, 64
    %v1021 = vpop.permute.xlu0 %1020
    %v1023 = vmul.f32 %v1018, %v1021
    %v1024 = vmul.f32 %v1013, %v928
    %v1025 = vadd.f32 %v1023, %v1024
    %v1026 = vadd.f32 %v200, %v275
    %v1027 = vadd.f32 %v202, %v277
    %1029 = vrot.lane.b32.xlu0 %v1025, 64
    %v1030 = vpop.permute.xlu0 %1029
    %v1031 = vsel %vm347, %v1030, 0
    %1033 = vmatprep.subr.mxu0 0.0
    %1034 = vmatpush1.msra.mxu0 0.0
    %1035 = vmatprep.subr.mxu0 0.0
    %1036 = vmatpush1.msra.mxu0 0.0
    %1037 = vmatprep.subr.mxu0 0.0
    %1038 = vmatpush1.msra.mxu0 0.0
    %1039 = vmatprep.subr.mxu0 0.0
    %1040 = vmatpush1.msra.mxu0 0.0
    %1041 = vmatprep.subr.mxu0 0.0
    %1042 = vmatpush1.msra.mxu0 0.0
    %1043 = vmatprep.subr.mxu0 0.0
    %1044 = vmatpush1.msra.mxu0 0.0
    %1045 = vmatprep.subr.mxu0 0.0
    %1046 = vmatpush1.msra.mxu0 0.0
    %1047 = vmatprep.subr.mxu0 0.0
    %1048 = vmatpush1.msra.mxu0 0.0
    %1049 = vmatprep.subr.mxu0 %v336
    %1050 = vmatpush1.msra.mxu0 %v335
    %1051 = vmatprep.subr.mxu0 %v334
    %1052 = vmatpush1.msra.mxu0 %v333
    %1053 = vmatprep.subr.mxu0 %v332
    %1054 = vmatpush1.msra.mxu0 %v331
    %1055 = vmatprep.subr.mxu0 %v330
    %1056 = vmatpush1.msra.mxu0 %v329
    %1057 = vmatprep.subr.mxu0 %v328
    %1058 = vmatpush1.msra.mxu0 %v327
    %1059 = vmatprep.subr.mxu0 %v326
    %1060 = vmatpush1.msra.mxu0 %v325
    %1061 = vmatprep.subr.mxu0 %v324
    %1062 = vmatpush1.msra.mxu0 %v323
    %1063 = vmatprep.subr.mxu0 %v322
    %1064 = vmatpush1.msra.mxu0 %v321
    %1065 = vmatprep.subr.mxu0 0.0
    %1066 = vmatpush2.msra.mxu0 0.0
    %1067 = vmatprep.subr.mxu0 0.0
    %1068 = vmatpush2.msra.mxu0 0.0
    %1069 = vmatprep.subr.mxu0 0.0
    %1070 = vmatpush2.msra.mxu0 0.0
    %1071 = vmatprep.subr.mxu0 0.0
    %1072 = vmatpush2.msra.mxu0 0.0
    %1073 = vmatprep.subr.mxu0 0.0
    %1074 = vmatpush2.msra.mxu0 0.0
    %1075 = vmatprep.subr.mxu0 0.0
    %1076 = vmatpush2.msra.mxu0 0.0
    %1077 = vmatprep.subr.mxu0 0.0
    %1078 = vmatpush2.msra.mxu0 0.0
    %1079 = vmatprep.subr.mxu0 0.0
    %1080 = vmatpush2.msra.mxu0 0.0
    %1081 = vmatprep.subr.mxu0 0.0
    %1082 = vmatpush2.msra.mxu0 0.0
    %1083 = vmatprep.subr.mxu0 0.0
    %1084 = vmatpush2.msra.mxu0 0.0
    %1085 = vmatprep.subr.mxu0 0.0
    %1086 = vmatpush2.msra.mxu0 0.0
    %1087 = vmatprep.subr.mxu0 0.0
    %1088 = vmatpush2.msra.mxu0 0.0
    %1089 = vmatprep.subr.mxu0 0.0
    %1090 = vmatpush2.msra.mxu0 0.0
    %1091 = vmatprep.subr.mxu0 0.0
    %1092 = vmatpush2.msra.mxu0 0.0
    %1093 = vmatprep.subr.mxu0 0.0
    %1094 = vmatpush2.msra.mxu0 0.0
    %1095 = vmatprep.subr.mxu0 0.0
    %1096 = vmatpush2.msra.mxu0 0.0
    %1097 = vmatprep.mubr.f32.mxu0 0.0
    %1098 = vmatmul.mubr.f32.gmra.mxu0 %v1031
    %v1099 = vpop.f32.mrf.mxu0
    %v1100 = vadd.f32 0.0, %v1099
    %v1101 = vpop.f32.mrf.mxu0
    %v1102 = vadd.f32 0.0, %v1101
    %1103 = vdwg.mxu0
    %v1104 = vadd.f32 %v1026, %v1100
    %v1105 = vxor.u32 %v1104, 2147483648
    %v1106 = vmul.f32 %v1105, 1.442695
    %v1107 = vpow.pop %v1106
    %v1108 = vadd.f32 %v1107, 1.0
    %v1109 = vrcp.pop %v1108
    %v1110 = vmul.f32 1.0, %v1109
    %v1111 = vadd.f32 %v1102, %v342
    %v1112 = vmul.f32 %v1110, %v1111
    %v1113 = vadd.f32 %v1027, %v1112
    %v1114 = vtanh.pop %v1113
    %v1115 = vsub.f32 1.0, %v1110
    %1117 = vrot.lane.b32.xlu0 %v1114, 64
    %v1118 = vpop.permute.xlu0 %1117
    %v1120 = vmul.f32 %v1115, %v1118
    %v1121 = vmul.f32 %v1110, %v1025
    %v1122 = vadd.f32 %v1120, %v1121
    %1124 = vrot.lane.b32.xlu0 %v1122, 64
    %v1125 = vpop.permute.xlu0 %1124
    %vm1134 = vcmask 261120
    %v1135 = vsel %vm1134, %v448, %v1125
    %v1136 = vsel %vm1134, %v545, %v1030
    %v1137 = vsel %vm1134, %v642, %v933
    %v1138 = vsel %vm1134, %v739, %v836
    %v1139 = vsel %vm1134, %v836, %v739
    %v1140 = vsel %vm1134, %v933, %v642
    %v1141 = vsel %vm1134, %v1030, %v545
    %v1142 = vsel %vm1134, %v1125, %v448
    %1143 = vst.msk [vmem:[%s7] sm:$0xff] %vm347, %v1135
    %1144 = vst.msk [vmem:[%s7 + $0x8] sm:$0xff] %vm347, %v1136
    %1145 = vst.msk [vmem:[%s7 + $0x10] sm:$0xff] %vm347, %v1137
    %1146 = vst.msk [vmem:[%s7 + $0x18] sm:$0xff] %vm347, %v1138
    %1147 = vst.msk [vmem:[%s7 + $0x20] sm:$0xff] %vm347, %v1139
    %1148 = vst.msk [vmem:[%s7 + $0x28] sm:$0xff] %vm347, %v1140
    %1149 = vst.msk [vmem:[%s7 + $0x30] sm:$0xff] %vm347, %v1141
    %1150 = vst.msk [vmem:[%s7 + $0x38] sm:$0xff] %vm347, %v1142
    %1151 = vst.msk [vmem:[%s8] sm:$0xff] %vm347, %v1125
    // Predicated region
    $region34: #{encoder_rnn_forward.1} parent=1 // pred_check
      _
    $region35: #{encoder_rnn_forward.1} parent=1 // pred_check_branch
      %1153 = sbr.rel (0) target = $region37
    $region36: #{encoder_rnn_forward.1} parent=1 // pred_region
      _
    $region37: #{encoder_rnn_forward.1} parent=1 // pred_fallthru
      _
    // Predicated region
    $region38: #{encoder_rnn_forward.1} parent=1 // pred_check
      _
    $region39: #{encoder_rnn_forward.1} parent=1 // pred_check_branch
      %1155 = sbr.rel (0) target = $region41
    $region40: #{encoder_rnn_forward.1} parent=1 // pred_region
      _
    $region41: #{encoder_rnn_forward.1} parent=1 // pred_fallthru
      _
    // Predicated region
    $region42: #{encoder_rnn_forward.1} parent=1 // pred_check
      _
    $region43: #{encoder_rnn_forward.1} parent=1 // pred_check_branch
      %1157 = sbr.rel (0) target = $region45
    $region44: #{encoder_rnn_forward.1} parent=1 // pred_region
      _
    $region45: #{encoder_rnn_forward.1} parent=1 // pred_fallthru
      _
    // Predicated region
    $region46: #{encoder_rnn_forward.1} parent=1 // pred_check
      _
    $region47: #{encoder_rnn_forward.1} parent=1 // pred_check_branch
      %1159 = sbr.rel (0) target = $region49
    $region48: #{encoder_rnn_forward.1} parent=1 // pred_region
      _
    $region49: #{encoder_rnn_forward.1} parent=1 // pred_fallthru
      _
    %1160 = vsyncpa [#allocation3], 1

</llo_original>
